<compile_context>
chip_gen: v5e
topology: v5e:2x2
jax: 0.10.0
libtpu: 0.0.40
codegen_flags: <defaults>
</compile_context>

<pallas_src>
import functools

import jax
import jax.numpy as jnp
from jax import lax
from jax.experimental import pallas as pl
from jax.experimental.pallas import tpu as pltpu

D_MODEL = 32
N_HEAD = 4
DIM_FF = 64
NUM_LAYERS = 2
SEQ = 8
BATCH = 2
EPS = 1e-5
MATMUL_DTYPE = jnp.bfloat16   # MXU operands; accumulation & elementwise stay f32


# ---------------------------------------------------------------------------
# Fused kernel: all encoder layers + optional final LayerNorm in one invocation
# ---------------------------------------------------------------------------
def _encoder_stack_kernel(src_ref, pos_ref,
                          wqk_ref, bqk_ref, wv_ref, bv_ref, wo_ref, bo_ref,
                          w1_ref, b1_ref, w2_ref, b2_ref,
                          g1_ref, be1_ref, g2_ref, be2_ref,
                          gf_ref, bf_ref,
                          out_ref, tok_ref,
                          *, nhead, num_layers, batch, seq_len,
                          apply_final_norm, mxu_dtype):
    """Full TransformerEncoder stack on a (B*L, D) activation slab in VMEM.

    Weight refs carry a leading `layer` axis; Q and K are fused into one (D, 2D)
    weight so every projection is a full-width (N, in) @ (in, out) matmul.
    """
    B, L = batch, seq_len
    N, D = src_ref.shape                       # N = B * L, rows ordered (b, l)
    hd = D // nhead
    G = nhead * B
    scale = 1.0 / float(hd) ** 0.5

    def mm(a, w, b):
        """(N, in) @ (in, out) on the MXU: bf16 operands, f32 accumulation."""
        out = lax.dot_general(a.astype(mxu_dtype), w,
                              (((1,), (0,)), ((), ())),
                              preferred_element_type=jnp.float32)
        return out + b

    def layernorm(z, g, b):
        mu = jnp.mean(z, axis=-1, keepdims=True)
        var = jnp.mean((z - mu) ** 2, axis=-1, keepdims=True)
        return (z - mu) * lax.rsqrt(var + EPS) * g + b

    def heads_to_groups(t2d):
        """(N, D) with head-major lanes -> (nhead*B, L, hd) leading-batch groups."""
        t3 = jnp.stack([t2d[:, h * hd:(h + 1) * hd] for h in range(nhead)], axis=0)
        return t3.reshape(G, L, hd)            # N = B*L (b-major) splits cleanly

    x = src_ref[...].astype(jnp.float32)       # (N, D)
    pos = pos_ref[...].astype(jnp.float32)

    toks = []
    for i in range(num_layers):                # static unroll (num_layers is tiny)
        # ---- self-attention: fused Q/K projection (q = k = src + pos), wide V proj
        qk = mm(x + pos, wqk_ref[i], bqk_ref[i])            # (N, 2*D)
        v = mm(x, wv_ref[i], bv_ref[i])                     # (N, D)   value = src
        q = qk[:, :D] * scale                               # PyTorch MHA q-scaling
        k = qk[:, D:]

        q_g = heads_to_groups(q)                            # (G, L, hd)
        k_g = heads_to_groups(k)
        v_g = heads_to_groups(v)

        s = jnp.einsum('gqd,gkd->gqk', q_g, k_g,
                       preferred_element_type=jnp.float32)  # (G, L, L)
        s = s - jnp.max(s, axis=-1, keepdims=True)
        p = jnp.exp(s)
        p = p * pl.reciprocal(jnp.sum(p, axis=-1, keepdims=True), approx=True)
        a_g = jnp.einsum('gqk,gkd->gqd', p, v_g,
                         preferred_element_type=jnp.float32)  # (G, L, hd)

        # heads back onto lanes (head-major) -> one full-width output projection
        a_h = a_g.reshape(nhead, N, hd)
        a = jnp.concatenate([a_h[h] for h in range(nhead)], axis=-1)    # (N, D)
        attn = mm(a, wo_ref[i], bo_ref[i])

        # ---- residual + LayerNorm1 (post-norm; dropout == identity in eval) ----
        x1 = layernorm(x + attn, g1_ref[i], be1_ref[i])

        # ---- FFN: Linear -> ReLU -> Linear, residual + LayerNorm2 ----
        hid = jnp.maximum(mm(x1, w1_ref[i], b1_ref[i]), 0.0)
        y = layernorm(x1 + mm(hid, w2_ref[i], b2_ref[i]), g2_ref[i], be2_ref[i])

        # TODO(synk): exact per-layer `tokens` semantics live inside
        # denet_utils.TransformerEncoderLayer; the leading (class) token of the
        # layer output is emitted here, matching the common MPPNet usage.
        toks.append(y.reshape(B, L, D)[:, 0, :])            # (B, D)
        x = y

    if apply_final_norm:
        x = layernorm(x, gf_ref[...], bf_ref[...])

    out_ref[...] = x
    tok_ref[...] = jnp.concatenate(toks, axis=0)            # (num_layers*B, D), one store


def _vmem_spec():
    return pl.BlockSpec(memory_space=pltpu.MemorySpace.VMEM)


# ---------------------------------------------------------------------------
# One-time host-side parameter re-layout (hoisted out of the forward path):
# stack layers, pre-transpose nn.Linear weights to (in, out), fuse Q & K,
# cast MXU operands to bf16.
# ---------------------------------------------------------------------------
def prepare_stacked_params(layer_params, norm_params, nhead=N_HEAD,
                           matmul_dtype=MATMUL_DTYPE):
    del nhead  # head split happens in-kernel via static lane slices
    d_model = layer_params[0]["wq"].shape[0]
    keys = ("wqk", "bqk", "wv", "bv", "wo", "bo",
            "w1", "b1", "w2", "b2", "g1", "be1", "g2", "be2")
    cols = {k: [] for k in keys}
    for p in layer_params:
        cols["wqk"].append(jnp.concatenate([p["wq"].T, p["wk"].T], axis=-1))   # (D, 2D)
        cols["bqk"].append(jnp.concatenate([p["bq"], p["bk"]], axis=-1))       # (1, 2D)
        cols["wv"].append(p["wv"].T)                                           # (D, D)
        cols["bv"].append(p["bv"])
        cols["wo"].append(p["wo"].T)                                           # (D, D)
        cols["bo"].append(p["bo"])
        cols["w1"].append(p["w1"].T)                                           # (D, FF)
        cols["b1"].append(p["b1"])
        cols["w2"].append(p["w2"].T)                                           # (FF, D)
        cols["b2"].append(p["b2"])
        cols["g1"].append(p["g1"])
        cols["be1"].append(p["be1"])
        cols["g2"].append(p["g2"])
        cols["be2"].append(p["be2"])
    stacked = {k: jnp.stack(v) for k, v in cols.items()}
    for k in ("wqk", "wv", "wo", "w1", "w2"):       # MXU operands only -> bf16
        stacked[k] = stacked[k].astype(matmul_dtype)
    if norm_params is not None:
        stacked["gf"] = norm_params["g"].reshape(1, d_model)
        stacked["bf"] = norm_params["b"].reshape(1, d_model)
        apply_final_norm = True
    else:
        stacked["gf"] = jnp.ones((1, d_model), jnp.float32)
        stacked["bf"] = jnp.zeros((1, d_model), jnp.float32)
        apply_final_norm = False
    return stacked, apply_final_norm


def _encoder_stack(src2d, pos2d, params, apply_final_norm, nhead, batch, seq_len):
    n, d = src2d.shape
    num_layers = params["wqk"].shape[0]
    hd = d // nhead
    dim_ff = params["w1"].shape[-1]
    g = nhead * batch

    args = (src2d, pos2d,
            params["wqk"], params["bqk"], params["wv"], params["bv"],
            params["wo"], params["bo"],
            params["w1"], params["b1"], params["w2"], params["b2"],
            params["g1"], params["be1"], params["g2"], params["be2"],
            params["gf"], params["bf"])

    flops_layer = (2 * n * d * (2 * d)                      # fused Q/K projection
                   + 2 * n * d * d                          # V projection
                   + 2 * 2 * g * seq_len * seq_len * hd     # QK^T and P·V
                   + 2 * n * d * d                          # output projection
                   + 2 * 2 * n * d * dim_ff)                # FFN
    flops = num_layers * flops_layer
    transcendentals = num_layers * (g * seq_len * seq_len   # exp
                                    + g * seq_len           # approx reciprocal
                                    + 2 * n) + n            # rsqrt in LayerNorms
    bytes_accessed = (sum(int(v.size) * v.dtype.itemsize for v in args)
                      + 4 * (n * d + num_layers * batch * d))

    kernel = functools.partial(
        _encoder_stack_kernel, nhead=nhead, num_layers=num_layers,
        batch=batch, seq_len=seq_len, apply_final_norm=apply_final_norm,
        mxu_dtype=params["wqk"].dtype)

    # TODO(synk): at real (non-toy) sizes, move the layer loop onto an "arbitrary"
    # grid axis with per-layer weight BlockSpecs (bounded VMEM, weight-DMA/compute
    # overlap — required headroom on v7x's 64 MiB VMEM) and add a "parallel" grid
    # axis over independent batches/proposals so v7x's second TensorCore is used.
    return pl.pallas_call(
        kernel,
        out_shape=(jax.ShapeDtypeStruct((n, d), jnp.float32),
                   jax.ShapeDtypeStruct((num_layers * batch, d), jnp.float32)),
        in_specs=[_vmem_spec() for _ in args],
        out_specs=(_vmem_spec(), _vmem_spec()),
        cost_estimate=pl.CostEstimate(flops=flops,
                                      transcendentals=transcendentals,
                                      bytes_accessed=bytes_accessed),
    )(*args)


# ---------------------------------------------------------------------------
# Public wrapper: mirrors TransformerEncoder.forward -> (output, token_list)
# ---------------------------------------------------------------------------
def transformer_encoder_forward(src, batch_dict, stacked_params, pos=None, *,
                                nhead=N_HEAD, apply_final_norm=True):
    """src/pos: (L, B, D) float32 — PyTorch seq-first convention.
    `stacked_params` comes from prepare_stacked_params (one-time setup).
    batch_dict is passed through (unused by the attention/FFN math)."""
    del batch_dict
    L, B, D = src.shape
    if pos is None:
        pos = jnp.zeros_like(src)
    num_layers = stacked_params["wqk"].shape[0]

    # one transpose in / one out (plain-JAX layout plumbing around the fused call)
    src2d = jnp.transpose(src, (1, 0, 2)).reshape(B * L, D)
    pos2d = jnp.transpose(pos, (1, 0, 2)).reshape(B * L, D)

    out2d, toks = _encoder_stack(src2d, pos2d, stacked_params,
                                 apply_final_norm, nhead, B, L)

    output = jnp.transpose(out2d.reshape(B, L, D), (1, 0, 2))          # (L, B, D)
    token_list = [toks[i * B:(i + 1) * B][None, :, :]                  # each (1, B, D)
                  for i in range(num_layers)]
    return output, token_list


# ---------------------------------------------------------------------------
# PyTorch-convention parameter init (weights stored (out, in) as in nn.Linear)
# ---------------------------------------------------------------------------
def init_params(key, num_layers, d_model, nhead, dim_ff):
    def xavier(k, shape):
        fan_out, fan_in = shape
        lim = (6.0 / (fan_in + fan_out)) ** 0.5
        return jax.random.uniform(k, shape, jnp.float32, -lim, lim)

    layers = []
    for _ in range(num_layers):
        key, *ks = jax.random.split(key, 7)
        layers.append(dict(
            wq=xavier(ks[0], (d_model, d_model)),
            wk=xavier(ks[1], (d_model, d_model)),
            wv=xavier(ks[2], (d_model, d_model)),
            bq=jnp.zeros((1, d_model), jnp.float32),
            bk=jnp.zeros((1, d_model), jnp.float32),
            bv=jnp.zeros((1, d_model), jnp.float32),
            wo=xavier(ks[3], (d_model, d_model)),
            bo=jnp.zeros((1, d_model), jnp.float32),
            w1=xavier(ks[4], (dim_ff, d_model)),
            b1=jnp.zeros((1, dim_ff), jnp.float32),
            w2=xavier(ks[5], (d_model, dim_ff)),
            b2=jnp.zeros((1, d_model), jnp.float32),
            g1=jnp.ones((1, d_model), jnp.float32),
            be1=jnp.zeros((1, d_model), jnp.float32),
            g2=jnp.ones((1, d_model), jnp.float32),
            be2=jnp.zeros((1, d_model), jnp.float32),
        ))
    norm = dict(g=jnp.ones((1, d_model), jnp.float32),
                b=jnp.zeros((1, d_model), jnp.float32))
    return layers, norm


if __name__ == "__main__":
    key = jax.random.PRNGKey(0)
    k_src, k_pos, k_par = jax.random.split(key, 3)

    src = jax.random.normal(k_src, (SEQ, BATCH, D_MODEL), jnp.float32)
    pos = jax.random.normal(k_pos, (SEQ, BATCH, D_MODEL), jnp.float32)
    layer_params, norm_params = init_params(k_par, NUM_LAYERS, D_MODEL, N_HEAD, DIM_FF)

    # One-time weight re-layout, hoisted out of the forward path; jit the forward
    # so the pallas_call is the only per-step work.
    stacked, apply_final_norm = prepare_stacked_params(layer_params, norm_params, N_HEAD)
    stacked = jax.tree_util.tree_map(jax.block_until_ready, stacked)

    fwd = jax.jit(functools.partial(transformer_encoder_forward,
                                    nhead=N_HEAD,
                                    apply_final_norm=apply_final_norm))

    batch_dict = {}  # carried through, unused by the layer math
    output, token_list = fwd(src, batch_dict, stacked, pos)

    output = jax.block_until_ready(output)
    token_list = [jax.block_until_ready(t) for t in token_list]

    assert output.shape == (SEQ, BATCH, D_MODEL)
    assert len(token_list) == NUM_LAYERS
    assert all(t.shape == (1, BATCH, D_MODEL) for t in token_list)
    assert bool(jnp.all(jnp.isfinite(output)))
    print("KERNEL_OK")
</pallas_src>

<mosaic_0001>
module attributes {stable_mosaic.version = 11 : i64} {
  func.func @_encoder_stack_kernel(%arg0: memref<16x32xf32, #tpu.memory_space<vmem>>, %arg1: memref<16x32xf32, #tpu.memory_space<vmem>>, %arg2: memref<2x32x64xbf16, #tpu.memory_space<vmem>>, %arg3: memref<2x1x64xf32, #tpu.memory_space<vmem>>, %arg4: memref<2x32x32xbf16, #tpu.memory_space<vmem>>, %arg5: memref<2x1x32xf32, #tpu.memory_space<vmem>>, %arg6: memref<2x32x32xbf16, #tpu.memory_space<vmem>>, %arg7: memref<2x1x32xf32, #tpu.memory_space<vmem>>, %arg8: memref<2x32x64xbf16, #tpu.memory_space<vmem>>, %arg9: memref<2x1x64xf32, #tpu.memory_space<vmem>>, %arg10: memref<2x64x32xbf16, #tpu.memory_space<vmem>>, %arg11: memref<2x1x32xf32, #tpu.memory_space<vmem>>, %arg12: memref<2x1x32xf32, #tpu.memory_space<vmem>>, %arg13: memref<2x1x32xf32, #tpu.memory_space<vmem>>, %arg14: memref<2x1x32xf32, #tpu.memory_space<vmem>>, %arg15: memref<2x1x32xf32, #tpu.memory_space<vmem>>, %arg16: memref<1x32xf32, #tpu.memory_space<vmem>>, %arg17: memref<1x32xf32, #tpu.memory_space<vmem>>, %arg18: memref<16x32xf32, #tpu.memory_space<vmem>>, %arg19: memref<4x32xf32, #tpu.memory_space<vmem>>) attributes {dimension_semantics = [], scalar_prefetch = 0 : i64, scratch_operands = 0 : i64, tpu.core_type = #tpu.core_type<tc>} {
    %c0 = arith.constant 0 : index
    %c0_0 = arith.constant 0 : index
    %0 = vector.load %arg0[%c0, %c0_0] : memref<16x32xf32, #tpu.memory_space<vmem>>, vector<16x32xf32>
    %c0_1 = arith.constant 0 : index
    %c0_2 = arith.constant 0 : index
    %1 = vector.load %arg1[%c0_1, %c0_2] : memref<16x32xf32, #tpu.memory_space<vmem>>, vector<16x32xf32>
    %2 = arith.addf %0, %1 : vector<16x32xf32>
    %c0_3 = arith.constant 0 : index
    %c0_4 = arith.constant 0 : index
    %c0_5 = arith.constant 0 : index
    %3 = vector.load %arg2[%c0_3, %c0_4, %c0_5] : memref<2x32x64xbf16, #tpu.memory_space<vmem>>, vector<1x32x64xbf16>
    %4 = vector.shape_cast %3 : vector<1x32x64xbf16> to vector<32x64xbf16>
    %c0_6 = arith.constant 0 : index
    %c0_7 = arith.constant 0 : index
    %c0_8 = arith.constant 0 : index
    %5 = vector.load %arg3[%c0_6, %c0_7, %c0_8] : memref<2x1x64xf32, #tpu.memory_space<vmem>>, vector<1x1x64xf32>
    %6 = vector.shape_cast %5 : vector<1x1x64xf32> to vector<1x64xf32>
    %7 = arith.truncf %2 : vector<16x32xf32> to vector<16x32xbf16>
    %cst = arith.constant dense<0.000000e+00> : vector<16x64xf32>
    %8 = tpu.matmul %7, %4, %cst {dimension_numbers = #tpu.dot_dimension_numbers<[1], [0], [0], [1], [0, 0, 1, 1], [], []>} : vector<16x32xbf16>, vector<32x64xbf16>, vector<16x64xf32> -> vector<16x64xf32>
    %9 = vector.broadcast %6 : vector<1x64xf32> to vector<16x64xf32>
    %10 = arith.addf %8, %9 : vector<16x64xf32>
    %c0_9 = arith.constant 0 : index
    %c0_10 = arith.constant 0 : index
    %c0_11 = arith.constant 0 : index
    %11 = vector.load %arg4[%c0_9, %c0_10, %c0_11] : memref<2x32x32xbf16, #tpu.memory_space<vmem>>, vector<1x32x32xbf16>
    %12 = vector.shape_cast %11 : vector<1x32x32xbf16> to vector<32x32xbf16>
    %c0_12 = arith.constant 0 : index
    %c0_13 = arith.constant 0 : index
    %c0_14 = arith.constant 0 : index
    %13 = vector.load %arg5[%c0_12, %c0_13, %c0_14] : memref<2x1x32xf32, #tpu.memory_space<vmem>>, vector<1x1x32xf32>
    %14 = vector.shape_cast %13 : vector<1x1x32xf32> to vector<1x32xf32>
    %15 = arith.truncf %0 : vector<16x32xf32> to vector<16x32xbf16>
    %cst_15 = arith.constant dense<0.000000e+00> : vector<16x32xf32>
    %16 = tpu.matmul %15, %12, %cst_15 {dimension_numbers = #tpu.dot_dimension_numbers<[1], [0], [0], [1], [0, 0, 1, 1], [], []>} : vector<16x32xbf16>, vector<32x32xbf16>, vector<16x32xf32> -> vector<16x32xf32>
    %17 = vector.broadcast %14 : vector<1x32xf32> to vector<16x32xf32>
    %18 = arith.addf %16, %17 : vector<16x32xf32>
    %19 = vector.extract_strided_slice %10 {offsets = [0, 0], sizes = [16, 32], strides = [1, 1]} : vector<16x64xf32> to vector<16x32xf32>
    %cst_16 = arith.constant 0.353553385 : f32
    %20 = vector.broadcast %cst_16 : f32 to vector<16x32xf32>
    %21 = arith.mulf %19, %20 : vector<16x32xf32>
    %22 = vector.extract_strided_slice %10 {offsets = [0, 32], sizes = [16, 32], strides = [1, 1]} : vector<16x64xf32> to vector<16x32xf32>
    %23 = vector.extract_strided_slice %21 {offsets = [0, 0], sizes = [16, 8], strides = [1, 1]} : vector<16x32xf32> to vector<16x8xf32>
    %24 = vector.extract_strided_slice %21 {offsets = [0, 8], sizes = [16, 8], strides = [1, 1]} : vector<16x32xf32> to vector<16x8xf32>
    %25 = vector.extract_strided_slice %21 {offsets = [0, 16], sizes = [16, 8], strides = [1, 1]} : vector<16x32xf32> to vector<16x8xf32>
    %26 = vector.extract_strided_slice %21 {offsets = [0, 24], sizes = [16, 8], strides = [1, 1]} : vector<16x32xf32> to vector<16x8xf32>
    %27 = vector.shape_cast %23 : vector<16x8xf32> to vector<1x16x8xf32>
    %28 = vector.shape_cast %24 : vector<16x8xf32> to vector<1x16x8xf32>
    %29 = vector.shape_cast %25 : vector<16x8xf32> to vector<1x16x8xf32>
    %30 = vector.shape_cast %26 : vector<16x8xf32> to vector<1x16x8xf32>
    %31 = tpu.concatenate %27, %28, %29, %30 in 0 : vector<1x16x8xf32>, vector<1x16x8xf32>, vector<1x16x8xf32>, vector<1x16x8xf32> -> vector<4x16x8xf32>
    %32 = vector.shape_cast %31 : vector<4x16x8xf32> to vector<8x8x8xf32>
    %33 = vector.extract_strided_slice %22 {offsets = [0, 0], sizes = [16, 8], strides = [1, 1]} : vector<16x32xf32> to vector<16x8xf32>
    %34 = vector.extract_strided_slice %22 {offsets = [0, 8], sizes = [16, 8], strides = [1, 1]} : vector<16x32xf32> to vector<16x8xf32>
    %35 = vector.extract_strided_slice %22 {offsets = [0, 16], sizes = [16, 8], strides = [1, 1]} : vector<16x32xf32> to vector<16x8xf32>
    %36 = vector.extract_strided_slice %22 {offsets = [0, 24], sizes = [16, 8], strides = [1, 1]} : vector<16x32xf32> to vector<16x8xf32>
    %37 = vector.shape_cast %33 : vector<16x8xf32> to vector<1x16x8xf32>
    %38 = vector.shape_cast %34 : vector<16x8xf32> to vector<1x16x8xf32>
    %39 = vector.shape_cast %35 : vector<16x8xf32> to vector<1x16x8xf32>
    %40 = vector.shape_cast %36 : vector<16x8xf32> to vector<1x16x8xf32>
    %41 = tpu.concatenate %37, %38, %39, %40 in 0 : vector<1x16x8xf32>, vector<1x16x8xf32>, vector<1x16x8xf32>, vector<1x16x8xf32> -> vector<4x16x8xf32>
    %42 = vector.shape_cast %41 : vector<4x16x8xf32> to vector<8x8x8xf32>
    %43 = vector.extract_strided_slice %18 {offsets = [0, 0], sizes = [16, 8], strides = [1, 1]} : vector<16x32xf32> to vector<16x8xf32>
    %44 = vector.extract_strided_slice %18 {offsets = [0, 8], sizes = [16, 8], strides = [1, 1]} : vector<16x32xf32> to vector<16x8xf32>
    %45 = vector.extract_strided_slice %18 {offsets = [0, 16], sizes = [16, 8], strides = [1, 1]} : vector<16x32xf32> to vector<16x8xf32>
    %46 = vector.extract_strided_slice %18 {offsets = [0, 24], sizes = [16, 8], strides = [1, 1]} : vector<16x32xf32> to vector<16x8xf32>
    %47 = vector.shape_cast %43 : vector<16x8xf32> to vector<1x16x8xf32>
    %48 = vector.shape_cast %44 : vector<16x8xf32> to vector<1x16x8xf32>
    %49 = vector.shape_cast %45 : vector<16x8xf32> to vector<1x16x8xf32>
    %50 = vector.shape_cast %46 : vector<16x8xf32> to vector<1x16x8xf32>
    %51 = tpu.concatenate %47, %48, %49, %50 in 0 : vector<1x16x8xf32>, vector<1x16x8xf32>, vector<1x16x8xf32>, vector<1x16x8xf32> -> vector<4x16x8xf32>
    %52 = vector.shape_cast %51 : vector<4x16x8xf32> to vector<8x8x8xf32>
    "tpu.trace_start"() <{level = 10 : i32, message = "gqd,gkd->gqk"}> : () -> ()
    %cst_17 = arith.constant dense<0.000000e+00> : vector<8x8x8xf32>
    %53 = tpu.matmul %32, %42, %cst_17 {dimension_numbers = #tpu.dot_dimension_numbers<[2], [2], [1], [1], [0, 0, 0, 1, 1, 1], [0], [0]>} : vector<8x8x8xf32>, vector<8x8x8xf32>, vector<8x8x8xf32> -> vector<8x8x8xf32>
    "tpu.trace_stop"() : () -> ()
    %cst_18 = arith.constant dense<0xFF800000> : vector<8x8xf32>
    %54 = vector.multi_reduction <maximumf>, %53, %cst_18 [2] : vector<8x8x8xf32> to vector<8x8xf32>
    %55 = vector.shape_cast %54 : vector<8x8xf32> to vector<8x8x1xf32>
    %56 = vector.broadcast %55 : vector<8x8x1xf32> to vector<8x8x8xf32>
    %57 = arith.subf %53, %56 : vector<8x8x8xf32>
    %58 = math.exp %57 : vector<8x8x8xf32>
    %cst_19 = arith.constant dense<0.000000e+00> : vector<8x8xf32>
    %59 = vector.multi_reduction <add>, %58, %cst_19 [2] : vector<8x8x8xf32> to vector<8x8xf32>
    %60 = vector.shape_cast %59 : vector<8x8xf32> to vector<8x8x1xf32>
    %61 = tpu.reciprocal %60 {approx = true} : vector<8x8x1xf32> -> vector<8x8x1xf32>
    %62 = vector.broadcast %61 : vector<8x8x1xf32> to vector<8x8x8xf32>
    %63 = arith.mulf %58, %62 : vector<8x8x8xf32>
    "tpu.trace_start"() <{level = 10 : i32, message = "gqk,gkd->gqd"}> : () -> ()
    %cst_20 = arith.constant dense<0.000000e+00> : vector<8x8x8xf32>
    %64 = tpu.matmul %63, %52, %cst_20 {dimension_numbers = #tpu.dot_dimension_numbers<[2], [1], [1], [2], [0, 0, 0, 1, 1, 2], [0], [0]>} : vector<8x8x8xf32>, vector<8x8x8xf32>, vector<8x8x8xf32> -> vector<8x8x8xf32>
    "tpu.trace_stop"() : () -> ()
    %65 = vector.shape_cast %64 : vector<8x8x8xf32> to vector<4x16x8xf32>
    %66 = vector.extract_strided_slice %65 {offsets = [0, 0, 0], sizes = [1, 16, 8], strides = [1, 1, 1]} : vector<4x16x8xf32> to vector<1x16x8xf32>
    %67 = vector.shape_cast %66 : vector<1x16x8xf32> to vector<16x8xf32>
    %68 = vector.extract_strided_slice %65 {offsets = [1, 0, 0], sizes = [1, 16, 8], strides = [1, 1, 1]} : vector<4x16x8xf32> to vector<1x16x8xf32>
    %69 = vector.shape_cast %68 : vector<1x16x8xf32> to vector<16x8xf32>
    %70 = vector.extract_strided_slice %65 {offsets = [2, 0, 0], sizes = [1, 16, 8], strides = [1, 1, 1]} : vector<4x16x8xf32> to vector<1x16x8xf32>
    %71 = vector.shape_cast %70 : vector<1x16x8xf32> to vector<16x8xf32>
    %72 = vector.extract_strided_slice %65 {offsets = [3, 0, 0], sizes = [1, 16, 8], strides = [1, 1, 1]} : vector<4x16x8xf32> to vector<1x16x8xf32>
    %73 = vector.shape_cast %72 : vector<1x16x8xf32> to vector<16x8xf32>
    %74 = tpu.concatenate %67, %69, %71, %73 in 1 : vector<16x8xf32>, vector<16x8xf32>, vector<16x8xf32>, vector<16x8xf32> -> vector<16x32xf32>
    %c0_21 = arith.constant 0 : index
    %c0_22 = arith.constant 0 : index
    %c0_23 = arith.constant 0 : index
    %75 = vector.load %arg6[%c0_21, %c0_22, %c0_23] : memref<2x32x32xbf16, #tpu.memory_space<vmem>>, vector<1x32x32xbf16>
    %76 = vector.shape_cast %75 : vector<1x32x32xbf16> to vector<32x32xbf16>
    %c0_24 = arith.constant 0 : index
    %c0_25 = arith.constant 0 : index
    %c0_26 = arith.constant 0 : index
    %77 = vector.load %arg7[%c0_24, %c0_25, %c0_26] : memref<2x1x32xf32, #tpu.memory_space<vmem>>, vector<1x1x32xf32>
    %78 = vector.shape_cast %77 : vector<1x1x32xf32> to vector<1x32xf32>
    %79 = arith.truncf %74 : vector<16x32xf32> to vector<16x32xbf16>
    %cst_27 = arith.constant dense<0.000000e+00> : vector<16x32xf32>
    %80 = tpu.matmul %79, %76, %cst_27 {dimension_numbers = #tpu.dot_dimension_numbers<[1], [0], [0], [1], [0, 0, 1, 1], [], []>} : vector<16x32xbf16>, vector<32x32xbf16>, vector<16x32xf32> -> vector<16x32xf32>
    %81 = vector.broadcast %78 : vector<1x32xf32> to vector<16x32xf32>
    %82 = arith.addf %80, %81 : vector<16x32xf32>
    %83 = arith.addf %0, %82 : vector<16x32xf32>
    %c0_28 = arith.constant 0 : index
    %c0_29 = arith.constant 0 : index
    %c0_30 = arith.constant 0 : index
    %84 = vector.load %arg12[%c0_28, %c0_29, %c0_30] : memref<2x1x32xf32, #tpu.memory_space<vmem>>, vector<1x1x32xf32>
    %85 = vector.shape_cast %84 : vector<1x1x32xf32> to vector<1x32xf32>
    %c0_31 = arith.constant 0 : index
    %c0_32 = arith.constant 0 : index
    %c0_33 = arith.constant 0 : index
    %86 = vector.load %arg13[%c0_31, %c0_32, %c0_33] : memref<2x1x32xf32, #tpu.memory_space<vmem>>, vector<1x1x32xf32>
    %87 = vector.shape_cast %86 : vector<1x1x32xf32> to vector<1x32xf32>
    %cst_34 = arith.constant dense<0.000000e+00> : vector<16xf32>
    %88 = vector.multi_reduction <add>, %83, %cst_34 [1] : vector<16x32xf32> to vector<16xf32>
    %89 = vector.shape_cast %88 : vector<16xf32> to vector<16x1xf32>
    %cst_35 = arith.constant 3.200000e+01 : f32
    %90 = vector.broadcast %cst_35 : f32 to vector<16x1xf32>
    %91 = arith.divf %89, %90 : vector<16x1xf32>
    %92 = vector.broadcast %91 : vector<16x1xf32> to vector<16x32xf32>
    %93 = arith.subf %83, %92 : vector<16x32xf32>
    %94 = arith.mulf %93, %93 : vector<16x32xf32>
    %cst_36 = arith.constant dense<0.000000e+00> : vector<16xf32>
    %95 = vector.multi_reduction <add>, %94, %cst_36 [1] : vector<16x32xf32> to vector<16xf32>
    %96 = vector.shape_cast %95 : vector<16xf32> to vector<16x1xf32>
    %cst_37 = arith.constant 3.200000e+01 : f32
    %97 = vector.broadcast %cst_37 : f32 to vector<16x1xf32>
    %98 = arith.divf %96, %97 : vector<16x1xf32>
    %99 = vector.broadcast %91 : vector<16x1xf32> to vector<16x32xf32>
    %100 = arith.subf %83, %99 : vector<16x32xf32>
    %cst_38 = arith.constant 9.99999974E-6 : f32
    %101 = vector.broadcast %cst_38 : f32 to vector<16x1xf32>
    %102 = arith.addf %98, %101 : vector<16x1xf32>
    %103 = math.rsqrt %102 : vector<16x1xf32>
    %104 = vector.broadcast %103 : vector<16x1xf32> to vector<16x32xf32>
    %105 = arith.mulf %100, %104 : vector<16x32xf32>
    %106 = vector.broadcast %85 : vector<1x32xf32> to vector<16x32xf32>
    %107 = arith.mulf %105, %106 : vector<16x32xf32>
    %108 = vector.broadcast %87 : vector<1x32xf32> to vector<16x32xf32>
    %109 = arith.addf %107, %108 : vector<16x32xf32>
    %c0_39 = arith.constant 0 : index
    %c0_40 = arith.constant 0 : index
    %c0_41 = arith.constant 0 : index
    %110 = vector.load %arg8[%c0_39, %c0_40, %c0_41] : memref<2x32x64xbf16, #tpu.memory_space<vmem>>, vector<1x32x64xbf16>
    %111 = vector.shape_cast %110 : vector<1x32x64xbf16> to vector<32x64xbf16>
    %c0_42 = arith.constant 0 : index
    %c0_43 = arith.constant 0 : index
    %c0_44 = arith.constant 0 : index
    %112 = vector.load %arg9[%c0_42, %c0_43, %c0_44] : memref<2x1x64xf32, #tpu.memory_space<vmem>>, vector<1x1x64xf32>
    %113 = vector.shape_cast %112 : vector<1x1x64xf32> to vector<1x64xf32>
    %114 = arith.truncf %109 : vector<16x32xf32> to vector<16x32xbf16>
    %cst_45 = arith.constant dense<0.000000e+00> : vector<16x64xf32>
    %115 = tpu.matmul %114, %111, %cst_45 {dimension_numbers = #tpu.dot_dimension_numbers<[1], [0], [0], [1], [0, 0, 1, 1], [], []>} : vector<16x32xbf16>, vector<32x64xbf16>, vector<16x64xf32> -> vector<16x64xf32>
    %116 = vector.broadcast %113 : vector<1x64xf32> to vector<16x64xf32>
    %117 = arith.addf %115, %116 : vector<16x64xf32>
    %cst_46 = arith.constant 0.000000e+00 : f32
    %118 = vector.broadcast %cst_46 : f32 to vector<16x64xf32>
    %119 = arith.maximumf %117, %118 : vector<16x64xf32>
    %c0_47 = arith.constant 0 : index
    %c0_48 = arith.constant 0 : index
    %c0_49 = arith.constant 0 : index
    %120 = vector.load %arg10[%c0_47, %c0_48, %c0_49] : memref<2x64x32xbf16, #tpu.memory_space<vmem>>, vector<1x64x32xbf16>
    %121 = vector.shape_cast %120 : vector<1x64x32xbf16> to vector<64x32xbf16>
    %c0_50 = arith.constant 0 : index
    %c0_51 = arith.constant 0 : index
    %c0_52 = arith.constant 0 : index
    %122 = vector.load %arg11[%c0_50, %c0_51, %c0_52] : memref<2x1x32xf32, #tpu.memory_space<vmem>>, vector<1x1x32xf32>
    %123 = vector.shape_cast %122 : vector<1x1x32xf32> to vector<1x32xf32>
    %124 = arith.truncf %119 : vector<16x64xf32> to vector<16x64xbf16>
    %cst_53 = arith.constant dense<0.000000e+00> : vector<16x32xf32>
    %125 = tpu.matmul %124, %121, %cst_53 {dimension_numbers = #tpu.dot_dimension_numbers<[1], [0], [0], [1], [0, 0, 1, 1], [], []>} : vector<16x64xbf16>, vector<64x32xbf16>, vector<16x32xf32> -> vector<16x32xf32>
    %126 = vector.broadcast %123 : vector<1x32xf32> to vector<16x32xf32>
    %127 = arith.addf %125, %126 : vector<16x32xf32>
    %128 = arith.addf %109, %127 : vector<16x32xf32>
    %c0_54 = arith.constant 0 : index
    %c0_55 = arith.constant 0 : index
    %c0_56 = arith.constant 0 : index
    %129 = vector.load %arg14[%c0_54, %c0_55, %c0_56] : memref<2x1x32xf32, #tpu.memory_space<vmem>>, vector<1x1x32xf32>
    %130 = vector.shape_cast %129 : vector<1x1x32xf32> to vector<1x32xf32>
    %c0_57 = arith.constant 0 : index
    %c0_58 = arith.constant 0 : index
    %c0_59 = arith.constant 0 : index
    %131 = vector.load %arg15[%c0_57, %c0_58, %c0_59] : memref<2x1x32xf32, #tpu.memory_space<vmem>>, vector<1x1x32xf32>
    %132 = vector.shape_cast %131 : vector<1x1x32xf32> to vector<1x32xf32>
    %cst_60 = arith.constant dense<0.000000e+00> : vector<16xf32>
    %133 = vector.multi_reduction <add>, %128, %cst_60 [1] : vector<16x32xf32> to vector<16xf32>
    %134 = vector.shape_cast %133 : vector<16xf32> to vector<16x1xf32>
    %cst_61 = arith.constant 3.200000e+01 : f32
    %135 = vector.broadcast %cst_61 : f32 to vector<16x1xf32>
    %136 = arith.divf %134, %135 : vector<16x1xf32>
    %137 = vector.broadcast %136 : vector<16x1xf32> to vector<16x32xf32>
    %138 = arith.subf %128, %137 : vector<16x32xf32>
    %139 = arith.mulf %138, %138 : vector<16x32xf32>
    %cst_62 = arith.constant dense<0.000000e+00> : vector<16xf32>
    %140 = vector.multi_reduction <add>, %139, %cst_62 [1] : vector<16x32xf32> to vector<16xf32>
    %141 = vector.shape_cast %140 : vector<16xf32> to vector<16x1xf32>
    %cst_63 = arith.constant 3.200000e+01 : f32
    %142 = vector.broadcast %cst_63 : f32 to vector<16x1xf32>
    %143 = arith.divf %141, %142 : vector<16x1xf32>
    %144 = vector.broadcast %136 : vector<16x1xf32> to vector<16x32xf32>
    %145 = arith.subf %128, %144 : vector<16x32xf32>
    %cst_64 = arith.constant 9.99999974E-6 : f32
    %146 = vector.broadcast %cst_64 : f32 to vector<16x1xf32>
    %147 = arith.addf %143, %146 : vector<16x1xf32>
    %148 = math.rsqrt %147 : vector<16x1xf32>
    %149 = vector.broadcast %148 : vector<16x1xf32> to vector<16x32xf32>
    %150 = arith.mulf %145, %149 : vector<16x32xf32>
    %151 = vector.broadcast %130 : vector<1x32xf32> to vector<16x32xf32>
    %152 = arith.mulf %150, %151 : vector<16x32xf32>
    %153 = vector.broadcast %132 : vector<1x32xf32> to vector<16x32xf32>
    %154 = arith.addf %152, %153 : vector<16x32xf32>
    %155 = vector.shape_cast %154 : vector<16x32xf32> to vector<2x8x32xf32>
    %156 = vector.extract_strided_slice %155 {offsets = [0, 0, 0], sizes = [2, 1, 32], strides = [1, 1, 1]} : vector<2x8x32xf32> to vector<2x1x32xf32>
    %157 = vector.shape_cast %156 : vector<2x1x32xf32> to vector<2x32xf32>
    %158 = arith.addf %154, %1 : vector<16x32xf32>
    %c1 = arith.constant 1 : index
    %c0_65 = arith.constant 0 : index
    %c0_66 = arith.constant 0 : index
    %159 = vector.load %arg2[%c1, %c0_65, %c0_66] : memref<2x32x64xbf16, #tpu.memory_space<vmem>>, vector<1x32x64xbf16>
    %160 = vector.shape_cast %159 : vector<1x32x64xbf16> to vector<32x64xbf16>
    %c1_67 = arith.constant 1 : index
    %c0_68 = arith.constant 0 : index
    %c0_69 = arith.constant 0 : index
    %161 = vector.load %arg3[%c1_67, %c0_68, %c0_69] : memref<2x1x64xf32, #tpu.memory_space<vmem>>, vector<1x1x64xf32>
    %162 = vector.shape_cast %161 : vector<1x1x64xf32> to vector<1x64xf32>
    %163 = arith.truncf %158 : vector<16x32xf32> to vector<16x32xbf16>
    %cst_70 = arith.constant dense<0.000000e+00> : vector<16x64xf32>
    %164 = tpu.matmul %163, %160, %cst_70 {dimension_numbers = #tpu.dot_dimension_numbers<[1], [0], [0], [1], [0, 0, 1, 1], [], []>} : vector<16x32xbf16>, vector<32x64xbf16>, vector<16x64xf32> -> vector<16x64xf32>
    %165 = vector.broadcast %162 : vector<1x64xf32> to vector<16x64xf32>
    %166 = arith.addf %164, %165 : vector<16x64xf32>
    %c1_71 = arith.constant 1 : index
    %c0_72 = arith.constant 0 : index
    %c0_73 = arith.constant 0 : index
    %167 = vector.load %arg4[%c1_71, %c0_72, %c0_73] : memref<2x32x32xbf16, #tpu.memory_space<vmem>>, vector<1x32x32xbf16>
    %168 = vector.shape_cast %167 : vector<1x32x32xbf16> to vector<32x32xbf16>
    %c1_74 = arith.constant 1 : index
    %c0_75 = arith.constant 0 : index
    %c0_76 = arith.constant 0 : index
    %169 = vector.load %arg5[%c1_74, %c0_75, %c0_76] : memref<2x1x32xf32, #tpu.memory_space<vmem>>, vector<1x1x32xf32>
    %170 = vector.shape_cast %169 : vector<1x1x32xf32> to vector<1x32xf32>
    %171 = arith.truncf %154 : vector<16x32xf32> to vector<16x32xbf16>
    %cst_77 = arith.constant dense<0.000000e+00> : vector<16x32xf32>
    %172 = tpu.matmul %171, %168, %cst_77 {dimension_numbers = #tpu.dot_dimension_numbers<[1], [0], [0], [1], [0, 0, 1, 1], [], []>} : vector<16x32xbf16>, vector<32x32xbf16>, vector<16x32xf32> -> vector<16x32xf32>
    %173 = vector.broadcast %170 : vector<1x32xf32> to vector<16x32xf32>
    %174 = arith.addf %172, %173 : vector<16x32xf32>
    %175 = vector.extract_strided_slice %166 {offsets = [0, 0], sizes = [16, 32], strides = [1, 1]} : vector<16x64xf32> to vector<16x32xf32>
    %cst_78 = arith.constant 0.353553385 : f32
    %176 = vector.broadcast %cst_78 : f32 to vector<16x32xf32>
    %177 = arith.mulf %175, %176 : vector<16x32xf32>
    %178 = vector.extract_strided_slice %166 {offsets = [0, 32], sizes = [16, 32], strides = [1, 1]} : vector<16x64xf32> to vector<16x32xf32>
    %179 = vector.extract_strided_slice %177 {offsets = [0, 0], sizes = [16, 8], strides = [1, 1]} : vector<16x32xf32> to vector<16x8xf32>
    %180 = vector.extract_strided_slice %177 {offsets = [0, 8], sizes = [16, 8], strides = [1, 1]} : vector<16x32xf32> to vector<16x8xf32>
    %181 = vector.extract_strided_slice %177 {offsets = [0, 16], sizes = [16, 8], strides = [1, 1]} : vector<16x32xf32> to vector<16x8xf32>
    %182 = vector.extract_strided_slice %177 {offsets = [0, 24], sizes = [16, 8], strides = [1, 1]} : vector<16x32xf32> to vector<16x8xf32>
    %183 = vector.shape_cast %179 : vector<16x8xf32> to vector<1x16x8xf32>
    %184 = vector.shape_cast %180 : vector<16x8xf32> to vector<1x16x8xf32>
    %185 = vector.shape_cast %181 : vector<16x8xf32> to vector<1x16x8xf32>
    %186 = vector.shape_cast %182 : vector<16x8xf32> to vector<1x16x8xf32>
    %187 = tpu.concatenate %183, %184, %185, %186 in 0 : vector<1x16x8xf32>, vector<1x16x8xf32>, vector<1x16x8xf32>, vector<1x16x8xf32> -> vector<4x16x8xf32>
    %188 = vector.shape_cast %187 : vector<4x16x8xf32> to vector<8x8x8xf32>
    %189 = vector.extract_strided_slice %178 {offsets = [0, 0], sizes = [16, 8], strides = [1, 1]} : vector<16x32xf32> to vector<16x8xf32>
    %190 = vector.extract_strided_slice %178 {offsets = [0, 8], sizes = [16, 8], strides = [1, 1]} : vector<16x32xf32> to vector<16x8xf32>
    %191 = vector.extract_strided_slice %178 {offsets = [0, 16], sizes = [16, 8], strides = [1, 1]} : vector<16x32xf32> to vector<16x8xf32>
    %192 = vector.extract_strided_slice %178 {offsets = [0, 24], sizes = [16, 8], strides = [1, 1]} : vector<16x32xf32> to vector<16x8xf32>
    %193 = vector.shape_cast %189 : vector<16x8xf32> to vector<1x16x8xf32>
    %194 = vector.shape_cast %190 : vector<16x8xf32> to vector<1x16x8xf32>
    %195 = vector.shape_cast %191 : vector<16x8xf32> to vector<1x16x8xf32>
    %196 = vector.shape_cast %192 : vector<16x8xf32> to vector<1x16x8xf32>
    %197 = tpu.concatenate %193, %194, %195, %196 in 0 : vector<1x16x8xf32>, vector<1x16x8xf32>, vector<1x16x8xf32>, vector<1x16x8xf32> -> vector<4x16x8xf32>
    %198 = vector.shape_cast %197 : vector<4x16x8xf32> to vector<8x8x8xf32>
    %199 = vector.extract_strided_slice %174 {offsets = [0, 0], sizes = [16, 8], strides = [1, 1]} : vector<16x32xf32> to vector<16x8xf32>
    %200 = vector.extract_strided_slice %174 {offsets = [0, 8], sizes = [16, 8], strides = [1, 1]} : vector<16x32xf32> to vector<16x8xf32>
    %201 = vector.extract_strided_slice %174 {offsets = [0, 16], sizes = [16, 8], strides = [1, 1]} : vector<16x32xf32> to vector<16x8xf32>
    %202 = vector.extract_strided_slice %174 {offsets = [0, 24], sizes = [16, 8], strides = [1, 1]} : vector<16x32xf32> to vector<16x8xf32>
    %203 = vector.shape_cast %199 : vector<16x8xf32> to vector<1x16x8xf32>
    %204 = vector.shape_cast %200 : vector<16x8xf32> to vector<1x16x8xf32>
    %205 = vector.shape_cast %201 : vector<16x8xf32> to vector<1x16x8xf32>
    %206 = vector.shape_cast %202 : vector<16x8xf32> to vector<1x16x8xf32>
    %207 = tpu.concatenate %203, %204, %205, %206 in 0 : vector<1x16x8xf32>, vector<1x16x8xf32>, vector<1x16x8xf32>, vector<1x16x8xf32> -> vector<4x16x8xf32>
    %208 = vector.shape_cast %207 : vector<4x16x8xf32> to vector<8x8x8xf32>
    "tpu.trace_start"() <{level = 10 : i32, message = "gqd,gkd->gqk"}> : () -> ()
    %cst_79 = arith.constant dense<0.000000e+00> : vector<8x8x8xf32>
    %209 = tpu.matmul %188, %198, %cst_79 {dimension_numbers = #tpu.dot_dimension_numbers<[2], [2], [1], [1], [0, 0, 0, 1, 1, 1], [0], [0]>} : vector<8x8x8xf32>, vector<8x8x8xf32>, vector<8x8x8xf32> -> vector<8x8x8xf32>
    "tpu.trace_stop"() : () -> ()
    %cst_80 = arith.constant dense<0xFF800000> : vector<8x8xf32>
    %210 = vector.multi_reduction <maximumf>, %209, %cst_80 [2] : vector<8x8x8xf32> to vector<8x8xf32>
    %211 = vector.shape_cast %210 : vector<8x8xf32> to vector<8x8x1xf32>
    %212 = vector.broadcast %211 : vector<8x8x1xf32> to vector<8x8x8xf32>
    %213 = arith.subf %209, %212 : vector<8x8x8xf32>
    %214 = math.exp %213 : vector<8x8x8xf32>
    %cst_81 = arith.constant dense<0.000000e+00> : vector<8x8xf32>
    %215 = vector.multi_reduction <add>, %214, %cst_81 [2] : vector<8x8x8xf32> to vector<8x8xf32>
    %216 = vector.shape_cast %215 : vector<8x8xf32> to vector<8x8x1xf32>
    %217 = tpu.reciprocal %216 {approx = true} : vector<8x8x1xf32> -> vector<8x8x1xf32>
    %218 = vector.broadcast %217 : vector<8x8x1xf32> to vector<8x8x8xf32>
    %219 = arith.mulf %214, %218 : vector<8x8x8xf32>
    "tpu.trace_start"() <{level = 10 : i32, message = "gqk,gkd->gqd"}> : () -> ()
    %cst_82 = arith.constant dense<0.000000e+00> : vector<8x8x8xf32>
    %220 = tpu.matmul %219, %208, %cst_82 {dimension_numbers = #tpu.dot_dimension_numbers<[2], [1], [1], [2], [0, 0, 0, 1, 1, 2], [0], [0]>} : vector<8x8x8xf32>, vector<8x8x8xf32>, vector<8x8x8xf32> -> vector<8x8x8xf32>
    "tpu.trace_stop"() : () -> ()
    %221 = vector.shape_cast %220 : vector<8x8x8xf32> to vector<4x16x8xf32>
    %222 = vector.extract_strided_slice %221 {offsets = [0, 0, 0], sizes = [1, 16, 8], strides = [1, 1, 1]} : vector<4x16x8xf32> to vector<1x16x8xf32>
    %223 = vector.shape_cast %222 : vector<1x16x8xf32> to vector<16x8xf32>
    %224 = vector.extract_strided_slice %221 {offsets = [1, 0, 0], sizes = [1, 16, 8], strides = [1, 1, 1]} : vector<4x16x8xf32> to vector<1x16x8xf32>
    %225 = vector.shape_cast %224 : vector<1x16x8xf32> to vector<16x8xf32>
    %226 = vector.extract_strided_slice %221 {offsets = [2, 0, 0], sizes = [1, 16, 8], strides = [1, 1, 1]} : vector<4x16x8xf32> to vector<1x16x8xf32>
    %227 = vector.shape_cast %226 : vector<1x16x8xf32> to vector<16x8xf32>
    %228 = vector.extract_strided_slice %221 {offsets = [3, 0, 0], sizes = [1, 16, 8], strides = [1, 1, 1]} : vector<4x16x8xf32> to vector<1x16x8xf32>
    %229 = vector.shape_cast %228 : vector<1x16x8xf32> to vector<16x8xf32>
    %230 = tpu.concatenate %223, %225, %227, %229 in 1 : vector<16x8xf32>, vector<16x8xf32>, vector<16x8xf32>, vector<16x8xf32> -> vector<16x32xf32>
    %c1_83 = arith.constant 1 : index
    %c0_84 = arith.constant 0 : index
    %c0_85 = arith.constant 0 : index
    %231 = vector.load %arg6[%c1_83, %c0_84, %c0_85] : memref<2x32x32xbf16, #tpu.memory_space<vmem>>, vector<1x32x32xbf16>
    %232 = vector.shape_cast %231 : vector<1x32x32xbf16> to vector<32x32xbf16>
    %c1_86 = arith.constant 1 : index
    %c0_87 = arith.constant 0 : index
    %c0_88 = arith.constant 0 : index
    %233 = vector.load %arg7[%c1_86, %c0_87, %c0_88] : memref<2x1x32xf32, #tpu.memory_space<vmem>>, vector<1x1x32xf32>
    %234 = vector.shape_cast %233 : vector<1x1x32xf32> to vector<1x32xf32>
    %235 = arith.truncf %230 : vector<16x32xf32> to vector<16x32xbf16>
    %cst_89 = arith.constant dense<0.000000e+00> : vector<16x32xf32>
    %236 = tpu.matmul %235, %232, %cst_89 {dimension_numbers = #tpu.dot_dimension_numbers<[1], [0], [0], [1], [0, 0, 1, 1], [], []>} : vector<16x32xbf16>, vector<32x32xbf16>, vector<16x32xf32> -> vector<16x32xf32>
    %237 = vector.broadcast %234 : vector<1x32xf32> to vector<16x32xf32>
    %238 = arith.addf %236, %237 : vector<16x32xf32>
    %239 = arith.addf %154, %238 : vector<16x32xf32>
    %c1_90 = arith.constant 1 : index
    %c0_91 = arith.constant 0 : index
    %c0_92 = arith.constant 0 : index
    %240 = vector.load %arg12[%c1_90, %c0_91, %c0_92] : memref<2x1x32xf32, #tpu.memory_space<vmem>>, vector<1x1x32xf32>
    %241 = vector.shape_cast %240 : vector<1x1x32xf32> to vector<1x32xf32>
    %c1_93 = arith.constant 1 : index
    %c0_94 = arith.constant 0 : index
    %c0_95 = arith.constant 0 : index
    %242 = vector.load %arg13[%c1_93, %c0_94, %c0_95] : memref<2x1x32xf32, #tpu.memory_space<vmem>>, vector<1x1x32xf32>
    %243 = vector.shape_cast %242 : vector<1x1x32xf32> to vector<1x32xf32>
    %cst_96 = arith.constant dense<0.000000e+00> : vector<16xf32>
    %244 = vector.multi_reduction <add>, %239, %cst_96 [1] : vector<16x32xf32> to vector<16xf32>
    %245 = vector.shape_cast %244 : vector<16xf32> to vector<16x1xf32>
    %cst_97 = arith.constant 3.200000e+01 : f32
    %246 = vector.broadcast %cst_97 : f32 to vector<16x1xf32>
    %247 = arith.divf %245, %246 : vector<16x1xf32>
    %248 = vector.broadcast %247 : vector<16x1xf32> to vector<16x32xf32>
    %249 = arith.subf %239, %248 : vector<16x32xf32>
    %250 = arith.mulf %249, %249 : vector<16x32xf32>
    %cst_98 = arith.constant dense<0.000000e+00> : vector<16xf32>
    %251 = vector.multi_reduction <add>, %250, %cst_98 [1] : vector<16x32xf32> to vector<16xf32>
    %252 = vector.shape_cast %251 : vector<16xf32> to vector<16x1xf32>
    %cst_99 = arith.constant 3.200000e+01 : f32
    %253 = vector.broadcast %cst_99 : f32 to vector<16x1xf32>
    %254 = arith.divf %252, %253 : vector<16x1xf32>
    %255 = vector.broadcast %247 : vector<16x1xf32> to vector<16x32xf32>
    %256 = arith.subf %239, %255 : vector<16x32xf32>
    %cst_100 = arith.constant 9.99999974E-6 : f32
    %257 = vector.broadcast %cst_100 : f32 to vector<16x1xf32>
    %258 = arith.addf %254, %257 : vector<16x1xf32>
    %259 = math.rsqrt %258 : vector<16x1xf32>
    %260 = vector.broadcast %259 : vector<16x1xf32> to vector<16x32xf32>
    %261 = arith.mulf %256, %260 : vector<16x32xf32>
    %262 = vector.broadcast %241 : vector<1x32xf32> to vector<16x32xf32>
    %263 = arith.mulf %261, %262 : vector<16x32xf32>
    %264 = vector.broadcast %243 : vector<1x32xf32> to vector<16x32xf32>
    %265 = arith.addf %263, %264 : vector<16x32xf32>
    %c1_101 = arith.constant 1 : index
    %c0_102 = arith.constant 0 : index
    %c0_103 = arith.constant 0 : index
    %266 = vector.load %arg8[%c1_101, %c0_102, %c0_103] : memref<2x32x64xbf16, #tpu.memory_space<vmem>>, vector<1x32x64xbf16>
    %267 = vector.shape_cast %266 : vector<1x32x64xbf16> to vector<32x64xbf16>
    %c1_104 = arith.constant 1 : index
    %c0_105 = arith.constant 0 : index
    %c0_106 = arith.constant 0 : index
    %268 = vector.load %arg9[%c1_104, %c0_105, %c0_106] : memref<2x1x64xf32, #tpu.memory_space<vmem>>, vector<1x1x64xf32>
    %269 = vector.shape_cast %268 : vector<1x1x64xf32> to vector<1x64xf32>
    %270 = arith.truncf %265 : vector<16x32xf32> to vector<16x32xbf16>
    %cst_107 = arith.constant dense<0.000000e+00> : vector<16x64xf32>
    %271 = tpu.matmul %270, %267, %cst_107 {dimension_numbers = #tpu.dot_dimension_numbers<[1], [0], [0], [1], [0, 0, 1, 1], [], []>} : vector<16x32xbf16>, vector<32x64xbf16>, vector<16x64xf32> -> vector<16x64xf32>
    %272 = vector.broadcast %269 : vector<1x64xf32> to vector<16x64xf32>
    %273 = arith.addf %271, %272 : vector<16x64xf32>
    %cst_108 = arith.constant 0.000000e+00 : f32
    %274 = vector.broadcast %cst_108 : f32 to vector<16x64xf32>
    %275 = arith.maximumf %273, %274 : vector<16x64xf32>
    %c1_109 = arith.constant 1 : index
    %c0_110 = arith.constant 0 : index
    %c0_111 = arith.constant 0 : index
    %276 = vector.load %arg10[%c1_109, %c0_110, %c0_111] : memref<2x64x32xbf16, #tpu.memory_space<vmem>>, vector<1x64x32xbf16>
    %277 = vector.shape_cast %276 : vector<1x64x32xbf16> to vector<64x32xbf16>
    %c1_112 = arith.constant 1 : index
    %c0_113 = arith.constant 0 : index
    %c0_114 = arith.constant 0 : index
    %278 = vector.load %arg11[%c1_112, %c0_113, %c0_114] : memref<2x1x32xf32, #tpu.memory_space<vmem>>, vector<1x1x32xf32>
    %279 = vector.shape_cast %278 : vector<1x1x32xf32> to vector<1x32xf32>
    %280 = arith.truncf %275 : vector<16x64xf32> to vector<16x64xbf16>
    %cst_115 = arith.constant dense<0.000000e+00> : vector<16x32xf32>
    %281 = tpu.matmul %280, %277, %cst_115 {dimension_numbers = #tpu.dot_dimension_numbers<[1], [0], [0], [1], [0, 0, 1, 1], [], []>} : vector<16x64xbf16>, vector<64x32xbf16>, vector<16x32xf32> -> vector<16x32xf32>
    %282 = vector.broadcast %279 : vector<1x32xf32> to vector<16x32xf32>
    %283 = arith.addf %281, %282 : vector<16x32xf32>
    %284 = arith.addf %265, %283 : vector<16x32xf32>
    %c1_116 = arith.constant 1 : index
    %c0_117 = arith.constant 0 : index
    %c0_118 = arith.constant 0 : index
    %285 = vector.load %arg14[%c1_116, %c0_117, %c0_118] : memref<2x1x32xf32, #tpu.memory_space<vmem>>, vector<1x1x32xf32>
    %286 = vector.shape_cast %285 : vector<1x1x32xf32> to vector<1x32xf32>
    %c1_119 = arith.constant 1 : index
    %c0_120 = arith.constant 0 : index
    %c0_121 = arith.constant 0 : index
    %287 = vector.load %arg15[%c1_119, %c0_120, %c0_121] : memref<2x1x32xf32, #tpu.memory_space<vmem>>, vector<1x1x32xf32>
    %288 = vector.shape_cast %287 : vector<1x1x32xf32> to vector<1x32xf32>
    %cst_122 = arith.constant dense<0.000000e+00> : vector<16xf32>
    %289 = vector.multi_reduction <add>, %284, %cst_122 [1] : vector<16x32xf32> to vector<16xf32>
    %290 = vector.shape_cast %289 : vector<16xf32> to vector<16x1xf32>
    %cst_123 = arith.constant 3.200000e+01 : f32
    %291 = vector.broadcast %cst_123 : f32 to vector<16x1xf32>
    %292 = arith.divf %290, %291 : vector<16x1xf32>
    %293 = vector.broadcast %292 : vector<16x1xf32> to vector<16x32xf32>
    %294 = arith.subf %284, %293 : vector<16x32xf32>
    %295 = arith.mulf %294, %294 : vector<16x32xf32>
    %cst_124 = arith.constant dense<0.000000e+00> : vector<16xf32>
    %296 = vector.multi_reduction <add>, %295, %cst_124 [1] : vector<16x32xf32> to vector<16xf32>
    %297 = vector.shape_cast %296 : vector<16xf32> to vector<16x1xf32>
    %cst_125 = arith.constant 3.200000e+01 : f32
    %298 = vector.broadcast %cst_125 : f32 to vector<16x1xf32>
    %299 = arith.divf %297, %298 : vector<16x1xf32>
    %300 = vector.broadcast %292 : vector<16x1xf32> to vector<16x32xf32>
    %301 = arith.subf %284, %300 : vector<16x32xf32>
    %cst_126 = arith.constant 9.99999974E-6 : f32
    %302 = vector.broadcast %cst_126 : f32 to vector<16x1xf32>
    %303 = arith.addf %299, %302 : vector<16x1xf32>
    %304 = math.rsqrt %303 : vector<16x1xf32>
    %305 = vector.broadcast %304 : vector<16x1xf32> to vector<16x32xf32>
    %306 = arith.mulf %301, %305 : vector<16x32xf32>
    %307 = vector.broadcast %286 : vector<1x32xf32> to vector<16x32xf32>
    %308 = arith.mulf %306, %307 : vector<16x32xf32>
    %309 = vector.broadcast %288 : vector<1x32xf32> to vector<16x32xf32>
    %310 = arith.addf %308, %309 : vector<16x32xf32>
    %311 = vector.shape_cast %310 : vector<16x32xf32> to vector<2x8x32xf32>
    %312 = vector.extract_strided_slice %311 {offsets = [0, 0, 0], sizes = [2, 1, 32], strides = [1, 1, 1]} : vector<2x8x32xf32> to vector<2x1x32xf32>
    %313 = vector.shape_cast %312 : vector<2x1x32xf32> to vector<2x32xf32>
    %c0_127 = arith.constant 0 : index
    %c0_128 = arith.constant 0 : index
    %314 = vector.load %arg16[%c0_127, %c0_128] : memref<1x32xf32, #tpu.memory_space<vmem>>, vector<1x32xf32>
    %c0_129 = arith.constant 0 : index
    %c0_130 = arith.constant 0 : index
    %315 = vector.load %arg17[%c0_129, %c0_130] : memref<1x32xf32, #tpu.memory_space<vmem>>, vector<1x32xf32>
    %cst_131 = arith.constant dense<0.000000e+00> : vector<16xf32>
    %316 = vector.multi_reduction <add>, %310, %cst_131 [1] : vector<16x32xf32> to vector<16xf32>
    %317 = vector.shape_cast %316 : vector<16xf32> to vector<16x1xf32>
    %cst_132 = arith.constant 3.200000e+01 : f32
    %318 = vector.broadcast %cst_132 : f32 to vector<16x1xf32>
    %319 = arith.divf %317, %318 : vector<16x1xf32>
    %320 = vector.broadcast %319 : vector<16x1xf32> to vector<16x32xf32>
    %321 = arith.subf %310, %320 : vector<16x32xf32>
    %322 = arith.mulf %321, %321 : vector<16x32xf32>
    %cst_133 = arith.constant dense<0.000000e+00> : vector<16xf32>
    %323 = vector.multi_reduction <add>, %322, %cst_133 [1] : vector<16x32xf32> to vector<16xf32>
    %324 = vector.shape_cast %323 : vector<16xf32> to vector<16x1xf32>
    %cst_134 = arith.constant 3.200000e+01 : f32
    %325 = vector.broadcast %cst_134 : f32 to vector<16x1xf32>
    %326 = arith.divf %324, %325 : vector<16x1xf32>
    %327 = vector.broadcast %319 : vector<16x1xf32> to vector<16x32xf32>
    %328 = arith.subf %310, %327 : vector<16x32xf32>
    %cst_135 = arith.constant 9.99999974E-6 : f32
    %329 = vector.broadcast %cst_135 : f32 to vector<16x1xf32>
    %330 = arith.addf %326, %329 : vector<16x1xf32>
    %331 = math.rsqrt %330 : vector<16x1xf32>
    %332 = vector.broadcast %331 : vector<16x1xf32> to vector<16x32xf32>
    %333 = arith.mulf %328, %332 : vector<16x32xf32>
    %334 = vector.broadcast %314 : vector<1x32xf32> to vector<16x32xf32>
    %335 = arith.mulf %333, %334 : vector<16x32xf32>
    %336 = vector.broadcast %315 : vector<1x32xf32> to vector<16x32xf32>
    %337 = arith.addf %335, %336 : vector<16x32xf32>
    %c0_136 = arith.constant 0 : index
    %c0_137 = arith.constant 0 : index
    %338 = vector.load %arg18[%c0_136, %c0_137] : memref<16x32xf32, #tpu.memory_space<vmem>>, vector<16x32xf32>
    tpu.vector_store %arg18[%c0_136, %c0_137], %337 {strides = array<i32>} : memref<16x32xf32, #tpu.memory_space<vmem>>, vector<16x32xf32>,
    %339 = tpu.concatenate %157, %313 in 0 : vector<2x32xf32>, vector<2x32xf32> -> vector<4x32xf32>
    %c0_138 = arith.constant 0 : index
    %c0_139 = arith.constant 0 : index
    %340 = vector.load %arg19[%c0_138, %c0_139] : memref<4x32xf32, #tpu.memory_space<vmem>>, vector<4x32xf32>
    tpu.vector_store %arg19[%c0_138, %c0_139], %339 {strides = array<i32>} : memref<4x32xf32, #tpu.memory_space<vmem>>, vector<4x32xf32>,
    return
  }
}

</mosaic_0001>

<llo_original>
// kernel: transformer_encoder_forward.1
$region0: #{transformer_encoder_forward.1}
  #allocation0 [shape = 'u32[]', space=smem, size = 0x4, offset = 0x4, fixed_abs, tag = 'smem constant byte address 0x4 - core index']
  #allocation1 [shape = 'u32[72,128]{1,0:T(1,128)}', space=vmem, size = 0x9000, scoped, tag = 'internal scratch']
  %s0 = inlined_call_operand.vmem [shape: f32[16,32], index: 0, kind: input, shape index: {}]
  %s1 = inlined_call_operand.vmem [shape: f32[16,32], index: 1, kind: input, shape index: {}]
  %s2 = inlined_call_operand.vmem [shape: bf16[2,32,64], index: 2, kind: input, shape index: {}]
  %s3 = inlined_call_operand.hbm [shape: f32[2,1,64], index: 3, kind: input, shape index: {}]
  %s4 = inlined_call_operand.vmem [shape: bf16[2,32,32], index: 4, kind: input, shape index: {}]
  %s5 = inlined_call_operand.hbm [shape: f32[2,1,32], index: 5, kind: input, shape index: {}]
  %s6 = inlined_call_operand.vmem [shape: bf16[2,32,32], index: 6, kind: input, shape index: {}]
  %s7 = inlined_call_operand.hbm [shape: f32[2,1,32], index: 7, kind: input, shape index: {}]
  %s8 = inlined_call_operand.vmem [shape: bf16[2,32,64], index: 8, kind: input, shape index: {}]
  %s9 = inlined_call_operand.hbm [shape: f32[2,1,64], index: 9, kind: input, shape index: {}]
  %s10 = inlined_call_operand.vmem [shape: bf16[2,64,32], index: 10, kind: input, shape index: {}]
  %s11 = inlined_call_operand.hbm [shape: f32[2,1,32], index: 11, kind: input, shape index: {}]
  %s12 = inlined_call_operand.hbm [shape: f32[2,1,32], index: 12, kind: input, shape index: {}]
  %s13 = inlined_call_operand.hbm [shape: f32[2,1,32], index: 13, kind: input, shape index: {}]
  %s14 = inlined_call_operand.hbm [shape: f32[2,1,32], index: 14, kind: input, shape index: {}]
  %s15 = inlined_call_operand.hbm [shape: f32[2,1,32], index: 15, kind: input, shape index: {}]
  %s16 = inlined_call_operand.hbm [shape: f32[1,32], index: 16, kind: input, shape index: {}]
  %s17 = inlined_call_operand.hbm [shape: f32[1,32], index: 17, kind: input, shape index: {}]
  %s18 = inlined_call_operand.vmem [shape: f32[16,32], index: 18, kind: output, shape index: {0}]
  %s19 = inlined_call_operand.vmem [shape: f32[4,32], index: 19, kind: output, shape index: {1}]
  %20 = xla_tuple %s18, %s19
  %s21 = sld [smem:[#allocation0]]
  $region134: #{transformer_encoder_forward.1} parent=0
    _
  %s23 = ssub.s32 1, %s21
  %s24 = scalar_select 0, %s23, %s21
  $region1: #{transformer_encoder_forward.1} parent=0
    #allocation2 [shape = 'u8[1024]{0}', space=vmem, size = 0x400, scoped, tag = 'input window, operand 3, single buffered']
    #allocation3 [shape = 's32[1]{0}', space=sflag, size = 0x4, scoped, tag = 'scoped memory for transformer_encoder_forward.1']
    #allocation4 [shape = 'u8[1024]{0}', space=vmem, size = 0x400, scoped, tag = 'input window, operand 5, single buffered']
    #allocation5 [shape = 's32[1]{0}', space=sflag, size = 0x4, scoped, tag = 'scoped memory for transformer_encoder_forward.1']
    #allocation6 [shape = 'u8[1024]{0}', space=vmem, size = 0x400, scoped, tag = 'input window, operand 7, single buffered']
    #allocation7 [shape = 'u8[1024]{0}', space=vmem, size = 0x400, scoped, tag = 'input window, operand 9, single buffered']
    #allocation8 [shape = 's32[1]{0}', space=sflag, size = 0x4, scoped, tag = 'scoped memory for transformer_encoder_forward.1']
    #allocation9 [shape = 'u8[1024]{0}', space=vmem, size = 0x400, scoped, tag = 'input window, operand 11, single buffered']
    #allocation10 [shape = 'u8[1024]{0}', space=vmem, size = 0x400, scoped, tag = 'input window, operand 12, single buffered']
    #allocation11 [shape = 's32[1]{0}', space=sflag, size = 0x4, scoped, tag = 'scoped memory for transformer_encoder_forward.1']
    #allocation12 [shape = 'u8[1024]{0}', space=vmem, size = 0x400, scoped, tag = 'input window, operand 13, single buffered']
    #allocation13 [shape = 'u8[1024]{0}', space=vmem, size = 0x400, scoped, tag = 'input window, operand 14, single buffered']
    #allocation14 [shape = 's32[1]{0}', space=sflag, size = 0x4, scoped, tag = 'scoped memory for transformer_encoder_forward.1']
    #allocation15 [shape = 'u8[1024]{0}', space=vmem, size = 0x400, scoped, tag = 'input window, operand 15, single buffered']
    #allocation16 [shape = 'u8[512]{0}', space=vmem, size = 0x400, scoped, tag = 'input window, operand 16, single buffered']
    #allocation17 [shape = 's32[1]{0}', space=sflag, size = 0x4, scoped, tag = 'scoped memory for transformer_encoder_forward.1']
    #allocation18 [shape = 'u8[512]{0}', space=vmem, size = 0x400, scoped, tag = 'input window, operand 17, single buffered']
    %25 = vsyncpa [#allocation3], 0
    %26 = vsyncpa [#allocation5], 0
    %27 = vsyncpa [#allocation8], 0
    %28 = vsyncpa [#allocation11], 0
    %29 = vsyncpa [#allocation14], 0
    %30 = vsyncpa [#allocation17], 0
    // Predicated region
    $region2: #{transformer_encoder_forward.1} parent=1 // pred_check
      _
    $region3: #{transformer_encoder_forward.1} parent=1 // pred_check_branch
      %32 = sbr.rel (0) target = $region5
    $region4: #{transformer_encoder_forward.1} parent=1 // pred_region
      _
    $region5: #{transformer_encoder_forward.1} parent=1 // pred_fallthru
      _
    // Predicated region
    $region6: #{transformer_encoder_forward.1} parent=1 // pred_check
      _
    $region7: #{transformer_encoder_forward.1} parent=1 // pred_check_branch
      %34 = sbr.rel (0) target = $region9
    $region8: #{transformer_encoder_forward.1} parent=1 // pred_region
      _
    $region9: #{transformer_encoder_forward.1} parent=1 // pred_fallthru
      _
    // Predicated region
    $region10: #{transformer_encoder_forward.1} parent=1 // pred_check
      _
    $region11: #{transformer_encoder_forward.1} parent=1 // pred_check_branch
      %36 = sbr.rel (0) target = $region13
    $region12: #{transformer_encoder_forward.1} parent=1 // pred_region
      _
    $region13: #{transformer_encoder_forward.1} parent=1 // pred_fallthru
      _
    // Predicated region
    $region14: #{transformer_encoder_forward.1} parent=1 // pred_check
      _
    $region15: #{transformer_encoder_forward.1} parent=1 // pred_check_branch
      %38 = sbr.rel (0) target = $region17
    $region16: #{transformer_encoder_forward.1} parent=1 // pred_region
      %40 = vsyncadd [#allocation3], 0
      %s41 = sshll.u32 %s3, 4
      %s42 = int_to_ptr.hbm [resolvable:$true] %s41
      %s43 = sshll.u32 [#allocation2], 4
      %s44 = int_to_ptr.vmem [resolvable:$true] %s43
      %49 = dma.hbm_to_vmem [thread:$0]  %s42, 32, %s44, [#allocation3], 16, 16, 1
    $region17: #{transformer_encoder_forward.1} parent=1 // pred_fallthru
      _
    // Predicated region
    $region18: #{transformer_encoder_forward.1} parent=1 // pred_check
      _
    $region19: #{transformer_encoder_forward.1} parent=1 // pred_check_branch
      %51 = sbr.rel (0) target = $region21
    $region20: #{transformer_encoder_forward.1} parent=1 // pred_region
      _
    $region21: #{transformer_encoder_forward.1} parent=1 // pred_fallthru
      _
    // Predicated region
    $region22: #{transformer_encoder_forward.1} parent=1 // pred_check
      _
    $region23: #{transformer_encoder_forward.1} parent=1 // pred_check_branch
      %53 = sbr.rel (0) target = $region25
    $region24: #{transformer_encoder_forward.1} parent=1 // pred_region
      %55 = vsyncadd [#allocation5], 0
      %s56 = sshll.u32 %s5, 4
      %s57 = int_to_ptr.hbm [resolvable:$true] %s56
      %s58 = sshll.u32 [#allocation4], 4
      %s59 = int_to_ptr.vmem [resolvable:$true] %s58
      %64 = dma.hbm_to_vmem [thread:$0]  %s57, 32, %s59, [#allocation5], 16, 16, 1
    $region25: #{transformer_encoder_forward.1} parent=1 // pred_fallthru
      _
    // Predicated region
    $region26: #{transformer_encoder_forward.1} parent=1 // pred_check
      _
    $region27: #{transformer_encoder_forward.1} parent=1 // pred_check_branch
      %66 = sbr.rel (0) target = $region29
    $region28: #{transformer_encoder_forward.1} parent=1 // pred_region
      _
    $region29: #{transformer_encoder_forward.1} parent=1 // pred_fallthru
      _
    // Predicated region
    $region30: #{transformer_encoder_forward.1} parent=1 // pred_check
      _
    $region31: #{transformer_encoder_forward.1} parent=1 // pred_check_branch
      %68 = sbr.rel (0) target = $region33
    $region32: #{transformer_encoder_forward.1} parent=1 // pred_region
      %70 = vsyncadd [#allocation5], 0
      %s71 = sshll.u32 %s7, 4
      %s72 = int_to_ptr.hbm [resolvable:$true] %s71
      %s73 = sshll.u32 [#allocation6], 4
      %s74 = int_to_ptr.vmem [resolvable:$true] %s73
      %79 = dma.hbm_to_vmem [thread:$0]  %s72, 32, %s74, [#allocation5], 16, 16, 1
    $region33: #{transformer_encoder_forward.1} parent=1 // pred_fallthru
      _
    // Predicated region
    $region34: #{transformer_encoder_forward.1} parent=1 // pred_check
      _
    $region35: #{transformer_encoder_forward.1} parent=1 // pred_check_branch
      %81 = sbr.rel (0) target = $region37
    $region36: #{transformer_encoder_forward.1} parent=1 // pred_region
      _
    $region37: #{transformer_encoder_forward.1} parent=1 // pred_fallthru
      _
    // Predicated region
    $region38: #{transformer_encoder_forward.1} parent=1 // pred_check
      _
    $region39: #{transformer_encoder_forward.1} parent=1 // pred_check_branch
      %83 = sbr.rel (0) target = $region41
    $region40: #{transformer_encoder_forward.1} parent=1 // pred_region
      %85 = vsyncadd [#allocation8], 0
      %s86 = sshll.u32 %s9, 4
      %s87 = int_to_ptr.hbm [resolvable:$true] %s86
      %s88 = sshll.u32 [#allocation7], 4
      %s89 = int_to_ptr.vmem [resolvable:$true] %s88
      %94 = dma.hbm_to_vmem [thread:$0]  %s87, 32, %s89, [#allocation8], 16, 16, 1
    $region41: #{transformer_encoder_forward.1} parent=1 // pred_fallthru
      _
    // Predicated region
    $region42: #{transformer_encoder_forward.1} parent=1 // pred_check
      _
    $region43: #{transformer_encoder_forward.1} parent=1 // pred_check_branch
      %96 = sbr.rel (0) target = $region45
    $region44: #{transformer_encoder_forward.1} parent=1 // pred_region
      _
    $region45: #{transformer_encoder_forward.1} parent=1 // pred_fallthru
      _
    // Predicated region
    $region46: #{transformer_encoder_forward.1} parent=1 // pred_check
      _
    $region47: #{transformer_encoder_forward.1} parent=1 // pred_check_branch
      %98 = sbr.rel (0) target = $region49
    $region48: #{transformer_encoder_forward.1} parent=1 // pred_region
      %100 = vsyncadd [#allocation8], 0
      %s101 = sshll.u32 %s11, 4
      %s102 = int_to_ptr.hbm [resolvable:$true] %s101
      %s103 = sshll.u32 [#allocation9], 4
      %s104 = int_to_ptr.vmem [resolvable:$true] %s103
      %109 = dma.hbm_to_vmem [thread:$0]  %s102, 32, %s104, [#allocation8], 16, 16, 1
    $region49: #{transformer_encoder_forward.1} parent=1 // pred_fallthru
      _
    // Predicated region
    $region50: #{transformer_encoder_forward.1} parent=1 // pred_check
      _
    $region51: #{transformer_encoder_forward.1} parent=1 // pred_check_branch
      %111 = sbr.rel (0) target = $region53
    $region52: #{transformer_encoder_forward.1} parent=1 // pred_region
      %113 = vsyncadd [#allocation11], 0
      %s114 = sshll.u32 %s12, 4
      %s115 = int_to_ptr.hbm [resolvable:$true] %s114
      %s116 = sshll.u32 [#allocation10], 4
      %s117 = int_to_ptr.vmem [resolvable:$true] %s116
      %122 = dma.hbm_to_vmem [thread:$0]  %s115, 32, %s117, [#allocation11], 16, 16, 1
    $region53: #{transformer_encoder_forward.1} parent=1 // pred_fallthru
      _
    // Predicated region
    $region54: #{transformer_encoder_forward.1} parent=1 // pred_check
      _
    $region55: #{transformer_encoder_forward.1} parent=1 // pred_check_branch
      %124 = sbr.rel (0) target = $region57
    $region56: #{transformer_encoder_forward.1} parent=1 // pred_region
      %126 = vsyncadd [#allocation11], 0
      %s127 = sshll.u32 %s13, 4
      %s128 = int_to_ptr.hbm [resolvable:$true] %s127
      %s129 = sshll.u32 [#allocation12], 4
      %s130 = int_to_ptr.vmem [resolvable:$true] %s129
      %135 = dma.hbm_to_vmem [thread:$0]  %s128, 32, %s130, [#allocation11], 16, 16, 1
    $region57: #{transformer_encoder_forward.1} parent=1 // pred_fallthru
      _
    // Predicated region
    $region58: #{transformer_encoder_forward.1} parent=1 // pred_check
      _
    $region59: #{transformer_encoder_forward.1} parent=1 // pred_check_branch
      %137 = sbr.rel (0) target = $region61
    $region60: #{transformer_encoder_forward.1} parent=1 // pred_region
      %139 = vsyncadd [#allocation14], 0
      %s140 = sshll.u32 %s14, 4
      %s141 = int_to_ptr.hbm [resolvable:$true] %s140
      %s142 = sshll.u32 [#allocation13], 4
      %s143 = int_to_ptr.vmem [resolvable:$true] %s142
      %148 = dma.hbm_to_vmem [thread:$0]  %s141, 32, %s143, [#allocation14], 16, 16, 1
    $region61: #{transformer_encoder_forward.1} parent=1 // pred_fallthru
      _
    // Predicated region
    $region62: #{transformer_encoder_forward.1} parent=1 // pred_check
      _
    $region63: #{transformer_encoder_forward.1} parent=1 // pred_check_branch
      %150 = sbr.rel (0) target = $region65
    $region64: #{transformer_encoder_forward.1} parent=1 // pred_region
      %152 = vsyncadd [#allocation14], 0
      %s153 = sshll.u32 %s15, 4
      %s154 = int_to_ptr.hbm [resolvable:$true] %s153
      %s155 = sshll.u32 [#allocation15], 4
      %s156 = int_to_ptr.vmem [resolvable:$true] %s155
      %161 = dma.hbm_to_vmem [thread:$0]  %s154, 32, %s156, [#allocation14], 16, 16, 1
    $region65: #{transformer_encoder_forward.1} parent=1 // pred_fallthru
      _
    // Predicated region
    $region66: #{transformer_encoder_forward.1} parent=1 // pred_check
      _
    $region67: #{transformer_encoder_forward.1} parent=1 // pred_check_branch
      %163 = sbr.rel (0) target = $region69
    $region68: #{transformer_encoder_forward.1} parent=1 // pred_region
      %165 = vsyncadd [#allocation17], 0
      %s167 = sshll.u32 %s16, 4
      %s168 = int_to_ptr.hbm [resolvable:$true] %s167
      %s169 = sshll.u32 [#allocation16], 4
      %s170 = int_to_ptr.vmem [resolvable:$true] %s169
      %172 = dma.hbm_to_vmem [thread:$0]  %s168, 16, %s170, [#allocation17]
    $region69: #{transformer_encoder_forward.1} parent=1 // pred_fallthru
      _
    // Predicated region
    $region70: #{transformer_encoder_forward.1} parent=1 // pred_check
      _
    $region71: #{transformer_encoder_forward.1} parent=1 // pred_check_branch
      %174 = sbr.rel (0) target = $region73
    $region72: #{transformer_encoder_forward.1} parent=1 // pred_region
      %176 = vsyncadd [#allocation17], 0
      %s178 = sshll.u32 %s17, 4
      %s179 = int_to_ptr.hbm [resolvable:$true] %s178
      %s180 = sshll.u32 [#allocation18], 4
      %s181 = int_to_ptr.vmem [resolvable:$true] %s180
      %183 = dma.hbm_to_vmem [thread:$0]  %s179, 16, %s181, [#allocation17]
    $region73: #{transformer_encoder_forward.1} parent=1 // pred_fallthru
      _
    // Predicated region
    $region74: #{transformer_encoder_forward.1} parent=1 // pred_check
      _
    $region75: #{transformer_encoder_forward.1} parent=1 // pred_check_branch
      %185 = sbr.rel (0) target = $region77
    $region76: #{transformer_encoder_forward.1} parent=1 // pred_region
      %187 = dma.done [#allocation3], 32
    $region77: #{transformer_encoder_forward.1} parent=1 // pred_fallthru
      _
    // Predicated region
    $region78: #{transformer_encoder_forward.1} parent=1 // pred_check
      _
    $region79: #{transformer_encoder_forward.1} parent=1 // pred_check_branch
      %189 = sbr.rel (0) target = $region81
    $region80: #{transformer_encoder_forward.1} parent=1 // pred_region
      %191 = dma.done [#allocation5], 32
    $region81: #{transformer_encoder_forward.1} parent=1 // pred_fallthru
      _
    // Predicated region
    $region82: #{transformer_encoder_forward.1} parent=1 // pred_check
      _
    $region83: #{transformer_encoder_forward.1} parent=1 // pred_check_branch
      %193 = sbr.rel (0) target = $region85
    $region84: #{transformer_encoder_forward.1} parent=1 // pred_region
      %195 = dma.done [#allocation5], 32
    $region85: #{transformer_encoder_forward.1} parent=1 // pred_fallthru
      _
    // Predicated region
    $region86: #{transformer_encoder_forward.1} parent=1 // pred_check
      _
    $region87: #{transformer_encoder_forward.1} parent=1 // pred_check_branch
      %197 = sbr.rel (0) target = $region89
    $region88: #{transformer_encoder_forward.1} parent=1 // pred_region
      %199 = dma.done [#allocation8], 32
    $region89: #{transformer_encoder_forward.1} parent=1 // pred_fallthru
      _
    // Predicated region
    $region90: #{transformer_encoder_forward.1} parent=1 // pred_check
      _
    $region91: #{transformer_encoder_forward.1} parent=1 // pred_check_branch
      %201 = sbr.rel (0) target = $region93
    $region92: #{transformer_encoder_forward.1} parent=1 // pred_region
      %203 = dma.done [#allocation8], 32
    $region93: #{transformer_encoder_forward.1} parent=1 // pred_fallthru
      _
    // Predicated region
    $region94: #{transformer_encoder_forward.1} parent=1 // pred_check
      _
    $region95: #{transformer_encoder_forward.1} parent=1 // pred_check_branch
      %205 = sbr.rel (0) target = $region97
    $region96: #{transformer_encoder_forward.1} parent=1 // pred_region
      %207 = dma.done [#allocation11], 32
    $region97: #{transformer_encoder_forward.1} parent=1 // pred_fallthru
      _
    // Predicated region
    $region98: #{transformer_encoder_forward.1} parent=1 // pred_check
      _
    $region99: #{transformer_encoder_forward.1} parent=1 // pred_check_branch
      %209 = sbr.rel (0) target = $region101
    $region100: #{transformer_encoder_forward.1} parent=1 // pred_region
      %211 = dma.done [#allocation11], 32
    $region101: #{transformer_encoder_forward.1} parent=1 // pred_fallthru
      _
    // Predicated region
    $region102: #{transformer_encoder_forward.1} parent=1 // pred_check
      _
    $region103: #{transformer_encoder_forward.1} parent=1 // pred_check_branch
      %213 = sbr.rel (0) target = $region105
    $region104: #{transformer_encoder_forward.1} parent=1 // pred_region
      %215 = dma.done [#allocation14], 32
    $region105: #{transformer_encoder_forward.1} parent=1 // pred_fallthru
      _
    // Predicated region
    $region106: #{transformer_encoder_forward.1} parent=1 // pred_check
      _
    $region107: #{transformer_encoder_forward.1} parent=1 // pred_check_branch
      %217 = sbr.rel (0) target = $region109
    $region108: #{transformer_encoder_forward.1} parent=1 // pred_region
      %219 = dma.done [#allocation14], 32
    $region109: #{transformer_encoder_forward.1} parent=1 // pred_fallthru
      _
    // Predicated region
    $region110: #{transformer_encoder_forward.1} parent=1 // pred_check
      _
    $region111: #{transformer_encoder_forward.1} parent=1 // pred_check_branch
      %221 = sbr.rel (0) target = $region113
    $region112: #{transformer_encoder_forward.1} parent=1 // pred_region
      %223 = dma.done [#allocation17], 16
    $region113: #{transformer_encoder_forward.1} parent=1 // pred_fallthru
      _
    // Predicated region
    $region114: #{transformer_encoder_forward.1} parent=1 // pred_check
      _
    $region115: #{transformer_encoder_forward.1} parent=1 // pred_check_branch
      %225 = sbr.rel (0) target = $region117
    $region116: #{transformer_encoder_forward.1} parent=1 // pred_region
      %227 = dma.done [#allocation17], 16
    $region117: #{transformer_encoder_forward.1} parent=1 // pred_fallthru
      _
    %v229 = vld [vmem:[%s0] sm:$0xff]
    %v230 = vld [vmem:[%s0 + $0x8] sm:$0xff]
    %v231 = vld [vmem:[%s1] sm:$0xff]
    %v232 = vld [vmem:[%s1 + $0x8] sm:$0xff]
    %v233 = vadd.f32 %v229, %v231
    %v234 = vadd.f32 %v230, %v232
    %v235 = vld [vmem:[%s2] sm:$0xf]
    %v236 = vld [vmem:[%s2 + $0x4] sm:$0xf]
    %v237 = vld [vmem:[%s2 + $0x8] sm:$0xf]
    %v238 = vld [vmem:[%s2 + $0xc] sm:$0xf]
    %v239 = vld [vmem:[#allocation2] sm:$0x1]
    %v240 = vpack.c.bf16 %v234, %v233
    %v242 = vperm.slane %v239, 0
    %v248 = vunpack.c.l.b16 %v235
    %v249 = vunpack.c.l.b16 %v236
    %v250 = vunpack.c.l.b16 %v237
    %v251 = vunpack.c.l.b16 %v238
    %v252 = vpack.c.b16 %v249, %v248
    %v253 = vpack.c.b16 %v251, %v250
    %vm256 = vcmask 261120
    %v258 = vsel %vm256, %v240, 0
    %260 = vmatpush.bf16.msra.mxu0 0
    %261 = vmatpush.bf16.msra.mxu0 0
    %262 = vmatpush.bf16.msra.mxu0 0
    %263 = vmatpush.bf16.msra.mxu0 0
    %264 = vmatpush.bf16.msra.mxu0 0
    %265 = vmatpush.bf16.msra.mxu0 0
    %266 = vmatpush.bf16.msra.mxu0 %v253
    %267 = vmatpush.bf16.msra.mxu0 %v252
    %268 = vmatmul.bf16.gmra.mxu0 %v258
    %v269 = vpop.f32.mrf.mxu0
    %v270 = vadd.f32 %v242, %v269
    %v271 = vpop.f32.mrf.mxu0
    %v272 = vadd.f32 %v242, %v271
    %273 = vdwg.mxu0
    %v274 = vld [vmem:[%s4] sm:$0xf]
    %v275 = vld [vmem:[%s4 + $0x4] sm:$0xf]
    %v276 = vld [vmem:[%s4 + $0x8] sm:$0xf]
    %v277 = vld [vmem:[%s4 + $0xc] sm:$0xf]
    %v278 = vld [vmem:[#allocation4] sm:$0x1]
    %v279 = vpack.c.bf16 %v230, %v229
    %v281 = vperm.slane %v278, 0
    %v287 = vunpack.c.l.b16 %v274
    %v288 = vunpack.c.l.b16 %v275
    %v289 = vunpack.c.l.b16 %v276
    %v290 = vunpack.c.l.b16 %v277
    %v291 = vpack.c.b16 %v288, %v287
    %v292 = vpack.c.b16 %v290, %v289
    %v296 = vsel %vm256, %v279, 0
    %298 = vmatpush.bf16.msra.mxu0 0
    %299 = vmatpush.bf16.msra.mxu0 0
    %300 = vmatpush.bf16.msra.mxu0 0
    %301 = vmatpush.bf16.msra.mxu0 0
    %302 = vmatpush.bf16.msra.mxu0 0
    %303 = vmatpush.bf16.msra.mxu0 0
    %304 = vmatpush.bf16.msra.mxu0 %v292
    %305 = vmatpush.bf16.msra.mxu0 %v291
    %306 = vmatmul.bf16.gmra.mxu0 %v296
    %v307 = vpop.f32.mrf.mxu0
    %v308 = vadd.f32 %v281, %v307
    %v309 = vpop.f32.mrf.mxu0
    %v310 = vadd.f32 %v281, %v309
    %311 = vdwg.mxu0
    %v312 = vmul.f32 %v270, 0.35355338
    %v313 = vmul.f32 %v272, 0.35355338
    %316 = vrot.lane.b32.xlu0 %v312, 120
    %v317 = vpop.permute.xlu0 %316
    %318 = vrot.lane.b32.xlu0 %v313, 120
    %v319 = vpop.permute.xlu0 %318
    %320 = vrot.lane.b32.xlu0 %v312, 112
    %v321 = vpop.permute.xlu0 %320
    %322 = vrot.lane.b32.xlu0 %v313, 112
    %v323 = vpop.permute.xlu0 %322
    %324 = vrot.lane.b32.xlu0 %v312, 104
    %v325 = vpop.permute.xlu0 %324
    %326 = vrot.lane.b32.xlu0 %v313, 104
    %v327 = vpop.permute.xlu0 %326
    %330 = vrot.lane.b32.xlu0 %v270, 120
    %v331 = vpop.permute.xlu0 %330
    %332 = vrot.lane.b32.xlu0 %v272, 120
    %v333 = vpop.permute.xlu0 %332
    %334 = vrot.lane.b32.xlu0 %v270, 112
    %v335 = vpop.permute.xlu0 %334
    %336 = vrot.lane.b32.xlu0 %v272, 112
    %v337 = vpop.permute.xlu0 %336
    %338 = vrot.lane.b32.xlu0 %v270, 104
    %v339 = vpop.permute.xlu0 %338
    %340 = vrot.lane.b32.xlu0 %v272, 104
    %v341 = vpop.permute.xlu0 %340
    %344 = vrot.lane.b32.xlu0 %v308, 120
    %v345 = vpop.permute.xlu0 %344
    %346 = vrot.lane.b32.xlu0 %v310, 120
    %v347 = vpop.permute.xlu0 %346
    %350 = vrot.lane.b32.xlu0 %v308, 112
    %v351 = vpop.permute.xlu0 %350
    %352 = vrot.lane.b32.xlu0 %v310, 112
    %v353 = vpop.permute.xlu0 %352
    %356 = vrot.lane.b32.xlu0 %v308, 104
    %v357 = vpop.permute.xlu0 %356
    %358 = vrot.lane.b32.xlu0 %v310, 104
    %v359 = vpop.permute.xlu0 %358
    %362 = vrot.lane.b32.xlu0 %v270, 96
    %v363 = vpop.permute.xlu0 %362
    %vm364 = vcmask 64512
    %v365 = vsel %vm364, %v312, 0
    %v367 = vsel %vm364, %v363, 0
    %369 = vmatpush.xpose.msra.mxu0 0.0
    %370 = vmatpush.xpose.msra.mxu0 0.0
    %371 = vmatpush.xpose.msra.mxu0 0.0
    %372 = vmatpush.xpose.msra.mxu0 0.0
    %373 = vmatpush.xpose.msra.mxu0 0.0
    %374 = vmatpush.xpose.msra.mxu0 0.0
    %375 = vmatpush.xpose.msra.mxu0 0.0
    %376 = vmatpush.xpose.msra.mxu0 0.0
    %377 = vmatpush.xpose.msra.mxu0 0.0
    %378 = vmatpush.xpose.msra.mxu0 0.0
    %379 = vmatpush.xpose.msra.mxu0 0.0
    %380 = vmatpush.xpose.msra.mxu0 0.0
    %381 = vmatpush.xpose.msra.mxu0 0.0
    %382 = vmatpush.xpose.msra.mxu0 0.0
    %383 = vmatpush.xpose.msra.mxu0 0.0
    %384 = vmatpush.xpose.msra.mxu0 %v367
    %385 = vmatmul.f32.gmra.mxu0 %v365
    %v386 = vpop.f32.mrf.mxu0
    %v387 = vadd.f32 0.0, %v386
    %388 = vdwg.mxu0
    %389 = vrot.lane.b32.xlu0 %v272, 96
    %v390 = vpop.permute.xlu0 %389
    %v391 = vsel %vm364, %v313, 0
    %v393 = vsel %vm364, %v390, 0
    %395 = vmatpush.xpose.msra.mxu0 0.0
    %396 = vmatpush.xpose.msra.mxu0 0.0
    %397 = vmatpush.xpose.msra.mxu0 0.0
    %398 = vmatpush.xpose.msra.mxu0 0.0
    %399 = vmatpush.xpose.msra.mxu0 0.0
    %400 = vmatpush.xpose.msra.mxu0 0.0
    %401 = vmatpush.xpose.msra.mxu0 0.0
    %402 = vmatpush.xpose.msra.mxu0 0.0
    %403 = vmatpush.xpose.msra.mxu0 0.0
    %404 = vmatpush.xpose.msra.mxu0 0.0
    %405 = vmatpush.xpose.msra.mxu0 0.0
    %406 = vmatpush.xpose.msra.mxu0 0.0
    %407 = vmatpush.xpose.msra.mxu0 0.0
    %408 = vmatpush.xpose.msra.mxu0 0.0
    %409 = vmatpush.xpose.msra.mxu0 0.0
    %410 = vmatpush.xpose.msra.mxu0 %v393
    %411 = vmatmul.f32.gmra.mxu0 %v391
    %v412 = vpop.f32.mrf.mxu0
    %v413 = vadd.f32 0.0, %v412
    %414 = vdwg.mxu0
    %415 = vrot.lane.b32.xlu0 %v331, 96
    %v416 = vpop.permute.xlu0 %415
    %v417 = vsel %vm364, %v317, 0
    %v419 = vsel %vm364, %v416, 0
    %421 = vmatpush.xpose.msra.mxu0 0.0
    %422 = vmatpush.xpose.msra.mxu0 0.0
    %423 = vmatpush.xpose.msra.mxu0 0.0
    %424 = vmatpush.xpose.msra.mxu0 0.0
    %425 = vmatpush.xpose.msra.mxu0 0.0
    %426 = vmatpush.xpose.msra.mxu0 0.0
    %427 = vmatpush.xpose.msra.mxu0 0.0
    %428 = vmatpush.xpose.msra.mxu0 0.0
    %429 = vmatpush.xpose.msra.mxu0 0.0
    %430 = vmatpush.xpose.msra.mxu0 0.0
    %431 = vmatpush.xpose.msra.mxu0 0.0
    %432 = vmatpush.xpose.msra.mxu0 0.0
    %433 = vmatpush.xpose.msra.mxu0 0.0
    %434 = vmatpush.xpose.msra.mxu0 0.0
    %435 = vmatpush.xpose.msra.mxu0 0.0
    %436 = vmatpush.xpose.msra.mxu0 %v419
    %437 = vmatmul.f32.gmra.mxu0 %v417
    %v438 = vpop.f32.mrf.mxu0
    %v439 = vadd.f32 0.0, %v438
    %440 = vdwg.mxu0
    %441 = vrot.lane.b32.xlu0 %v333, 96
    %v442 = vpop.permute.xlu0 %441
    %v443 = vsel %vm364, %v319, 0
    %v445 = vsel %vm364, %v442, 0
    %447 = vmatpush.xpose.msra.mxu0 0.0
    %448 = vmatpush.xpose.msra.mxu0 0.0
    %449 = vmatpush.xpose.msra.mxu0 0.0
    %450 = vmatpush.xpose.msra.mxu0 0.0
    %451 = vmatpush.xpose.msra.mxu0 0.0
    %452 = vmatpush.xpose.msra.mxu0 0.0
    %453 = vmatpush.xpose.msra.mxu0 0.0
    %454 = vmatpush.xpose.msra.mxu0 0.0
    %455 = vmatpush.xpose.msra.mxu0 0.0
    %456 = vmatpush.xpose.msra.mxu0 0.0
    %457 = vmatpush.xpose.msra.mxu0 0.0
    %458 = vmatpush.xpose.msra.mxu0 0.0
    %459 = vmatpush.xpose.msra.mxu0 0.0
    %460 = vmatpush.xpose.msra.mxu0 0.0
    %461 = vmatpush.xpose.msra.mxu0 0.0
    %462 = vmatpush.xpose.msra.mxu0 %v445
    %463 = vmatmul.f32.gmra.mxu0 %v443
    %v464 = vpop.f32.mrf.mxu0
    %v465 = vadd.f32 0.0, %v464
    %466 = vdwg.mxu0
    %467 = vrot.lane.b32.xlu0 %v335, 96
    %v468 = vpop.permute.xlu0 %467
    %v469 = vsel %vm364, %v321, 0
    %v471 = vsel %vm364, %v468, 0
    %473 = vmatpush.xpose.msra.mxu0 0.0
    %474 = vmatpush.xpose.msra.mxu0 0.0
    %475 = vmatpush.xpose.msra.mxu0 0.0
    %476 = vmatpush.xpose.msra.mxu0 0.0
    %477 = vmatpush.xpose.msra.mxu0 0.0
    %478 = vmatpush.xpose.msra.mxu0 0.0
    %479 = vmatpush.xpose.msra.mxu0 0.0
    %480 = vmatpush.xpose.msra.mxu0 0.0
    %481 = vmatpush.xpose.msra.mxu0 0.0
    %482 = vmatpush.xpose.msra.mxu0 0.0
    %483 = vmatpush.xpose.msra.mxu0 0.0
    %484 = vmatpush.xpose.msra.mxu0 0.0
    %485 = vmatpush.xpose.msra.mxu0 0.0
    %486 = vmatpush.xpose.msra.mxu0 0.0
    %487 = vmatpush.xpose.msra.mxu0 0.0
    %488 = vmatpush.xpose.msra.mxu0 %v471
    %489 = vmatmul.f32.gmra.mxu0 %v469
    %v490 = vpop.f32.mrf.mxu0
    %v491 = vadd.f32 0.0, %v490
    %492 = vdwg.mxu0
    %493 = vrot.lane.b32.xlu0 %v337, 96
    %v494 = vpop.permute.xlu0 %493
    %v495 = vsel %vm364, %v323, 0
    %v497 = vsel %vm364, %v494, 0
    %499 = vmatpush.xpose.msra.mxu0 0.0
    %500 = vmatpush.xpose.msra.mxu0 0.0
    %501 = vmatpush.xpose.msra.mxu0 0.0
    %502 = vmatpush.xpose.msra.mxu0 0.0
    %503 = vmatpush.xpose.msra.mxu0 0.0
    %504 = vmatpush.xpose.msra.mxu0 0.0
    %505 = vmatpush.xpose.msra.mxu0 0.0
    %506 = vmatpush.xpose.msra.mxu0 0.0
    %507 = vmatpush.xpose.msra.mxu0 0.0
    %508 = vmatpush.xpose.msra.mxu0 0.0
    %509 = vmatpush.xpose.msra.mxu0 0.0
    %510 = vmatpush.xpose.msra.mxu0 0.0
    %511 = vmatpush.xpose.msra.mxu0 0.0
    %512 = vmatpush.xpose.msra.mxu0 0.0
    %513 = vmatpush.xpose.msra.mxu0 0.0
    %514 = vmatpush.xpose.msra.mxu0 %v497
    %515 = vmatmul.f32.gmra.mxu0 %v495
    %v516 = vpop.f32.mrf.mxu0
    %v517 = vadd.f32 0.0, %v516
    %518 = vdwg.mxu0
    %519 = vrot.lane.b32.xlu0 %v339, 96
    %v520 = vpop.permute.xlu0 %519
    %v521 = vsel %vm364, %v325, 0
    %v523 = vsel %vm364, %v520, 0
    %525 = vmatpush.xpose.msra.mxu0 0.0
    %526 = vmatpush.xpose.msra.mxu0 0.0
    %527 = vmatpush.xpose.msra.mxu0 0.0
    %528 = vmatpush.xpose.msra.mxu0 0.0
    %529 = vmatpush.xpose.msra.mxu0 0.0
    %530 = vmatpush.xpose.msra.mxu0 0.0
    %531 = vmatpush.xpose.msra.mxu0 0.0
    %532 = vmatpush.xpose.msra.mxu0 0.0
    %533 = vmatpush.xpose.msra.mxu0 0.0
    %534 = vmatpush.xpose.msra.mxu0 0.0
    %535 = vmatpush.xpose.msra.mxu0 0.0
    %536 = vmatpush.xpose.msra.mxu0 0.0
    %537 = vmatpush.xpose.msra.mxu0 0.0
    %538 = vmatpush.xpose.msra.mxu0 0.0
    %539 = vmatpush.xpose.msra.mxu0 0.0
    %540 = vmatpush.xpose.msra.mxu0 %v523
    %541 = vmatmul.f32.gmra.mxu0 %v521
    %v542 = vpop.f32.mrf.mxu0
    %v543 = vadd.f32 0.0, %v542
    %544 = vdwg.mxu0
    %545 = vrot.lane.b32.xlu0 %v341, 96
    %v546 = vpop.permute.xlu0 %545
    %v547 = vsel %vm364, %v327, 0
    %v549 = vsel %vm364, %v546, 0
    %551 = vmatpush.xpose.msra.mxu0 0.0
    %552 = vmatpush.xpose.msra.mxu0 0.0
    %553 = vmatpush.xpose.msra.mxu0 0.0
    %554 = vmatpush.xpose.msra.mxu0 0.0
    %555 = vmatpush.xpose.msra.mxu0 0.0
    %556 = vmatpush.xpose.msra.mxu0 0.0
    %557 = vmatpush.xpose.msra.mxu0 0.0
    %558 = vmatpush.xpose.msra.mxu0 0.0
    %559 = vmatpush.xpose.msra.mxu0 0.0
    %560 = vmatpush.xpose.msra.mxu0 0.0
    %561 = vmatpush.xpose.msra.mxu0 0.0
    %562 = vmatpush.xpose.msra.mxu0 0.0
    %563 = vmatpush.xpose.msra.mxu0 0.0
    %564 = vmatpush.xpose.msra.mxu0 0.0
    %565 = vmatpush.xpose.msra.mxu0 0.0
    %566 = vmatpush.xpose.msra.mxu0 %v549
    %567 = vmatmul.f32.gmra.mxu0 %v547
    %v568 = vpop.f32.mrf.mxu0
    %v569 = vadd.f32 0.0, %v568
    %570 = vdwg.mxu0
    %v571 = vsel %vm364, %v387, -inf
    %572 = vmax.xlane.f32.xlu0 %v571
    %v573 = vpop.xlane.xlu0 %572
    %v574 = vsel %vm364, %v413, -inf
    %575 = vmax.xlane.f32.xlu0 %v574
    %v576 = vpop.xlane.xlu0 %575
    %v577 = vsel %vm364, %v439, -inf
    %578 = vmax.xlane.f32.xlu0 %v577
    %v579 = vpop.xlane.xlu0 %578
    %v580 = vsel %vm364, %v465, -inf
    %581 = vmax.xlane.f32.xlu0 %v580
    %v582 = vpop.xlane.xlu0 %581
    %v583 = vsel %vm364, %v491, -inf
    %584 = vmax.xlane.f32.xlu0 %v583
    %v585 = vpop.xlane.xlu0 %584
    %v586 = vsel %vm364, %v517, -inf
    %587 = vmax.xlane.f32.xlu0 %v586
    %v588 = vpop.xlane.xlu0 %587
    %v589 = vsel %vm364, %v543, -inf
    %590 = vmax.xlane.f32.xlu0 %v589
    %v591 = vpop.xlane.xlu0 %590
    %v592 = vsel %vm364, %v569, -inf
    %593 = vmax.xlane.f32.xlu0 %v592
    %v594 = vpop.xlane.xlu0 %593
    %v595 = vsub.f32 %v387, %v573
    %v596 = vsub.f32 %v413, %v576
    %v597 = vsub.f32 %v439, %v579
    %v598 = vsub.f32 %v465, %v582
    %v599 = vsub.f32 %v491, %v585
    %v600 = vsub.f32 %v517, %v588
    %v601 = vsub.f32 %v543, %v591
    %v602 = vsub.f32 %v569, %v594
    %v603 = vmul.f32 %v595, 1.442695
    %v604 = vpow.pop %v603
    %v605 = vmul.f32 %v596, 1.442695
    %v606 = vpow.pop %v605
    %v607 = vmul.f32 %v597, 1.442695
    %v608 = vpow.pop %v607
    %v609 = vmul.f32 %v598, 1.442695
    %v610 = vpow.pop %v609
    %v611 = vmul.f32 %v599, 1.442695
    %v612 = vpow.pop %v611
    %v613 = vmul.f32 %v600, 1.442695
    %v614 = vpow.pop %v613
    %v615 = vmul.f32 %v601, 1.442695
    %v616 = vpow.pop %v615
    %v617 = vmul.f32 %v602, 1.442695
    %v618 = vpow.pop %v617
    %v619 = vsel %vm364, %v604, 0.0
    %620 = vadd.xlane.f32.xlu0 %v619
    %v621 = vpop.xlane.xlu0 %620
    %v622 = vsel %vm364, %v606, 0.0
    %623 = vadd.xlane.f32.xlu0 %v622
    %v624 = vpop.xlane.xlu0 %623
    %v625 = vsel %vm364, %v608, 0.0
    %626 = vadd.xlane.f32.xlu0 %v625
    %v627 = vpop.xlane.xlu0 %626
    %v628 = vsel %vm364, %v610, 0.0
    %629 = vadd.xlane.f32.xlu0 %v628
    %v630 = vpop.xlane.xlu0 %629
    %v631 = vsel %vm364, %v612, 0.0
    %632 = vadd.xlane.f32.xlu0 %v631
    %v633 = vpop.xlane.xlu0 %632
    %v634 = vsel %vm364, %v614, 0.0
    %635 = vadd.xlane.f32.xlu0 %v634
    %v636 = vpop.xlane.xlu0 %635
    %v637 = vsel %vm364, %v616, 0.0
    %638 = vadd.xlane.f32.xlu0 %v637
    %v639 = vpop.xlane.xlu0 %638
    %v640 = vsel %vm364, %v618, 0.0
    %641 = vadd.xlane.f32.xlu0 %v640
    %v642 = vpop.xlane.xlu0 %641
    %v643 = vrcp.pop %v621
    %v644 = vrcp.pop %v624
    %v645 = vrcp.pop %v627
    %v646 = vrcp.pop %v630
    %v647 = vrcp.pop %v633
    %v648 = vrcp.pop %v636
    %v649 = vrcp.pop %v639
    %v650 = vrcp.pop %v642
    %v651 = vmul.f32 %v604, %v643
    %v652 = vmul.f32 %v606, %v644
    %v653 = vmul.f32 %v608, %v645
    %v654 = vmul.f32 %v610, %v646
    %v655 = vmul.f32 %v612, %v647
    %v656 = vmul.f32 %v614, %v648
    %v657 = vmul.f32 %v616, %v649
    %v658 = vmul.f32 %v618, %v650
    %v660 = vsel %vm364, %v651, 0
    %662 = vmatpush.msra.mxu0 0.0
    %663 = vmatpush.msra.mxu0 0.0
    %664 = vmatpush.msra.mxu0 0.0
    %665 = vmatpush.msra.mxu0 0.0
    %666 = vmatpush.msra.mxu0 0.0
    %667 = vmatpush.msra.mxu0 0.0
    %668 = vmatpush.msra.mxu0 0.0
    %669 = vmatpush.msra.mxu0 0.0
    %670 = vmatpush.msra.mxu0 0.0
    %671 = vmatpush.msra.mxu0 0.0
    %672 = vmatpush.msra.mxu0 0.0
    %673 = vmatpush.msra.mxu0 0.0
    %674 = vmatpush.msra.mxu0 0.0
    %675 = vmatpush.msra.mxu0 0.0
    %676 = vmatpush.msra.mxu0 0.0
    %677 = vmatpush.msra.mxu0 %v308
    %678 = vmatmul.f32.gmra.mxu0 %v660
    %v679 = vpop.f32.mrf.mxu0
    %v680 = vadd.f32 0.0, %v679
    %681 = vdwg.mxu0
    %v683 = vsel %vm364, %v652, 0
    %685 = vmatpush.msra.mxu0 0.0
    %686 = vmatpush.msra.mxu0 0.0
    %687 = vmatpush.msra.mxu0 0.0
    %688 = vmatpush.msra.mxu0 0.0
    %689 = vmatpush.msra.mxu0 0.0
    %690 = vmatpush.msra.mxu0 0.0
    %691 = vmatpush.msra.mxu0 0.0
    %692 = vmatpush.msra.mxu0 0.0
    %693 = vmatpush.msra.mxu0 0.0
    %694 = vmatpush.msra.mxu0 0.0
    %695 = vmatpush.msra.mxu0 0.0
    %696 = vmatpush.msra.mxu0 0.0
    %697 = vmatpush.msra.mxu0 0.0
    %698 = vmatpush.msra.mxu0 0.0
    %699 = vmatpush.msra.mxu0 0.0
    %700 = vmatpush.msra.mxu0 %v310
    %701 = vmatmul.f32.gmra.mxu0 %v683
    %v702 = vpop.f32.mrf.mxu0
    %v703 = vadd.f32 0.0, %v702
    %704 = vdwg.mxu0
    %v706 = vsel %vm364, %v653, 0
    %708 = vmatpush.msra.mxu0 0.0
    %709 = vmatpush.msra.mxu0 0.0
    %710 = vmatpush.msra.mxu0 0.0
    %711 = vmatpush.msra.mxu0 0.0
    %712 = vmatpush.msra.mxu0 0.0
    %713 = vmatpush.msra.mxu0 0.0
    %714 = vmatpush.msra.mxu0 0.0
    %715 = vmatpush.msra.mxu0 0.0
    %716 = vmatpush.msra.mxu0 0.0
    %717 = vmatpush.msra.mxu0 0.0
    %718 = vmatpush.msra.mxu0 0.0
    %719 = vmatpush.msra.mxu0 0.0
    %720 = vmatpush.msra.mxu0 0.0
    %721 = vmatpush.msra.mxu0 0.0
    %722 = vmatpush.msra.mxu0 0.0
    %723 = vmatpush.msra.mxu0 %v345
    %724 = vmatmul.f32.gmra.mxu0 %v706
    %v725 = vpop.f32.mrf.mxu0
    %v726 = vadd.f32 0.0, %v725
    %727 = vdwg.mxu0
    %v729 = vsel %vm364, %v654, 0
    %731 = vmatpush.msra.mxu0 0.0
    %732 = vmatpush.msra.mxu0 0.0
    %733 = vmatpush.msra.mxu0 0.0
    %734 = vmatpush.msra.mxu0 0.0
    %735 = vmatpush.msra.mxu0 0.0
    %736 = vmatpush.msra.mxu0 0.0
    %737 = vmatpush.msra.mxu0 0.0
    %738 = vmatpush.msra.mxu0 0.0
    %739 = vmatpush.msra.mxu0 0.0
    %740 = vmatpush.msra.mxu0 0.0
    %741 = vmatpush.msra.mxu0 0.0
    %742 = vmatpush.msra.mxu0 0.0
    %743 = vmatpush.msra.mxu0 0.0
    %744 = vmatpush.msra.mxu0 0.0
    %745 = vmatpush.msra.mxu0 0.0
    %746 = vmatpush.msra.mxu0 %v347
    %747 = vmatmul.f32.gmra.mxu0 %v729
    %v748 = vpop.f32.mrf.mxu0
    %v749 = vadd.f32 0.0, %v748
    %750 = vdwg.mxu0
    %v752 = vsel %vm364, %v655, 0
    %754 = vmatpush.msra.mxu0 0.0
    %755 = vmatpush.msra.mxu0 0.0
    %756 = vmatpush.msra.mxu0 0.0
    %757 = vmatpush.msra.mxu0 0.0
    %758 = vmatpush.msra.mxu0 0.0
    %759 = vmatpush.msra.mxu0 0.0
    %760 = vmatpush.msra.mxu0 0.0
    %761 = vmatpush.msra.mxu0 0.0
    %762 = vmatpush.msra.mxu0 0.0
    %763 = vmatpush.msra.mxu0 0.0
    %764 = vmatpush.msra.mxu0 0.0
    %765 = vmatpush.msra.mxu0 0.0
    %766 = vmatpush.msra.mxu0 0.0
    %767 = vmatpush.msra.mxu0 0.0
    %768 = vmatpush.msra.mxu0 0.0
    %769 = vmatpush.msra.mxu0 %v351
    %770 = vmatmul.f32.gmra.mxu0 %v752
    %v771 = vpop.f32.mrf.mxu0
    %v772 = vadd.f32 0.0, %v771
    %773 = vdwg.mxu0
    %v775 = vsel %vm364, %v656, 0
    %777 = vmatpush.msra.mxu0 0.0
    %778 = vmatpush.msra.mxu0 0.0
    %779 = vmatpush.msra.mxu0 0.0
    %780 = vmatpush.msra.mxu0 0.0
    %781 = vmatpush.msra.mxu0 0.0
    %782 = vmatpush.msra.mxu0 0.0
    %783 = vmatpush.msra.mxu0 0.0
    %784 = vmatpush.msra.mxu0 0.0
    %785 = vmatpush.msra.mxu0 0.0
    %786 = vmatpush.msra.mxu0 0.0
    %787 = vmatpush.msra.mxu0 0.0
    %788 = vmatpush.msra.mxu0 0.0
    %789 = vmatpush.msra.mxu0 0.0
    %790 = vmatpush.msra.mxu0 0.0
    %791 = vmatpush.msra.mxu0 0.0
    %792 = vmatpush.msra.mxu0 %v353
    %793 = vmatmul.f32.gmra.mxu0 %v775
    %v794 = vpop.f32.mrf.mxu0
    %v795 = vadd.f32 0.0, %v794
    %796 = vdwg.mxu0
    %v798 = vsel %vm364, %v657, 0
    %800 = vmatpush.msra.mxu0 0.0
    %801 = vmatpush.msra.mxu0 0.0
    %802 = vmatpush.msra.mxu0 0.0
    %803 = vmatpush.msra.mxu0 0.0
    %804 = vmatpush.msra.mxu0 0.0
    %805 = vmatpush.msra.mxu0 0.0
    %806 = vmatpush.msra.mxu0 0.0
    %807 = vmatpush.msra.mxu0 0.0
    %808 = vmatpush.msra.mxu0 0.0
    %809 = vmatpush.msra.mxu0 0.0
    %810 = vmatpush.msra.mxu0 0.0
    %811 = vmatpush.msra.mxu0 0.0
    %812 = vmatpush.msra.mxu0 0.0
    %813 = vmatpush.msra.mxu0 0.0
    %814 = vmatpush.msra.mxu0 0.0
    %815 = vmatpush.msra.mxu0 %v357
    %816 = vmatmul.f32.gmra.mxu0 %v798
    %v817 = vpop.f32.mrf.mxu0
    %v818 = vadd.f32 0.0, %v817
    %819 = vdwg.mxu0
    %v821 = vsel %vm364, %v658, 0
    %823 = vmatpush.msra.mxu0 0.0
    %824 = vmatpush.msra.mxu0 0.0
    %825 = vmatpush.msra.mxu0 0.0
    %826 = vmatpush.msra.mxu0 0.0
    %827 = vmatpush.msra.mxu0 0.0
    %828 = vmatpush.msra.mxu0 0.0
    %829 = vmatpush.msra.mxu0 0.0
    %830 = vmatpush.msra.mxu0 0.0
    %831 = vmatpush.msra.mxu0 0.0
    %832 = vmatpush.msra.mxu0 0.0
    %833 = vmatpush.msra.mxu0 0.0
    %834 = vmatpush.msra.mxu0 0.0
    %835 = vmatpush.msra.mxu0 0.0
    %836 = vmatpush.msra.mxu0 0.0
    %837 = vmatpush.msra.mxu0 0.0
    %838 = vmatpush.msra.mxu0 %v359
    %839 = vmatmul.f32.gmra.mxu0 %v821
    %v840 = vpop.f32.mrf.mxu0
    %v841 = vadd.f32 0.0, %v840
    %842 = vdwg.mxu0
    %845 = vrot.lane.b32.xlu0 %v726, 8
    %v846 = vpop.permute.xlu0 %845
    %847 = vrot.lane.b32.xlu0 %v749, 8
    %v848 = vpop.permute.xlu0 %847
    %853 = vrot.lane.b32.xlu0 %v772, 16
    %v854 = vpop.permute.xlu0 %853
    %855 = vrot.lane.b32.xlu0 %v795, 16
    %v856 = vpop.permute.xlu0 %855
    %861 = vrot.lane.b32.xlu0 %v818, 24
    %v862 = vpop.permute.xlu0 %861
    %863 = vrot.lane.b32.xlu0 %v841, 24
    %v864 = vpop.permute.xlu0 %863
    %v867 = vsel %vm364, %v680, %v846
    %v868 = vsel %vm364, %v703, %v848
    %vm869 = vcmask 130048
    %v870 = vsel %vm869, %v867, %v854
    %v871 = vsel %vm869, %v868, %v856
    %vm872 = vcmask 195584
    %v873 = vsel %vm872, %v870, %v862
    %v874 = vsel %vm872, %v871, %v864
    %v875 = vld [vmem:[%s6] sm:$0xf]
    %v876 = vld [vmem:[%s6 + $0x4] sm:$0xf]
    %v877 = vld [vmem:[%s6 + $0x8] sm:$0xf]
    %v878 = vld [vmem:[%s6 + $0xc] sm:$0xf]
    %v879 = vld [vmem:[#allocation6] sm:$0x1]
    %v880 = vpack.c.bf16 %v874, %v873
    %v882 = vperm.slane %v879, 0
    %v888 = vunpack.c.l.b16 %v875
    %v889 = vunpack.c.l.b16 %v876
    %v890 = vunpack.c.l.b16 %v877
    %v891 = vunpack.c.l.b16 %v878
    %v892 = vpack.c.b16 %v889, %v888
    %v893 = vpack.c.b16 %v891, %v890
    %v897 = vsel %vm256, %v880, 0
    %899 = vmatpush.bf16.msra.mxu0 0
    %900 = vmatpush.bf16.msra.mxu0 0
    %901 = vmatpush.bf16.msra.mxu0 0
    %902 = vmatpush.bf16.msra.mxu0 0
    %903 = vmatpush.bf16.msra.mxu0 0
    %904 = vmatpush.bf16.msra.mxu0 0
    %905 = vmatpush.bf16.msra.mxu0 %v893
    %906 = vmatpush.bf16.msra.mxu0 %v892
    %907 = vmatmul.bf16.gmra.mxu0 %v897
    %v908 = vpop.f32.mrf.mxu0
    %v909 = vadd.f32 %v882, %v908
    %v910 = vpop.f32.mrf.mxu0
    %v911 = vadd.f32 %v882, %v910
    %912 = vdwg.mxu0
    %v913 = vadd.f32 %v229, %v909
    %v914 = vadd.f32 %v230, %v911
    %v915 = vld [vmem:[#allocation10] sm:$0x1]
    %v916 = vld [vmem:[#allocation12] sm:$0x1]
    %v917 = vsel %vm256, %v913, 0.0
    %918 = vadd.xlane.f32.xlu0 %v917
    %v919 = vpop.xlane.xlu0 %918
    %v920 = vsel %vm256, %v914, 0.0
    %921 = vadd.xlane.f32.xlu0 %v920
    %v922 = vpop.xlane.xlu0 %921
    %v923 = vrcp.pop 32.0
    %v924 = vmul.f32 32.0, %v923
    %v925 = vsub.f32 1.0, %v924
    %v926 = vmul.f32 %v923, %v925
    %v927 = vadd.f32 %v923, %v926
    %vm928 = vweird.f32 %v923
    %v929 = vsel %vm928, %v923, %v927
    %v930 = vmul.f32 %v919, %v929
    %v931 = vmul.f32 %v922, %v929
    %v932 = vsub.f32 %v913, %v930
    %v933 = vsub.f32 %v914, %v931
    %v934 = vmul.f32 %v932, %v932
    %v935 = vmul.f32 %v933, %v933
    %v936 = vsel %vm256, %v934, 0.0
    %937 = vadd.xlane.f32.xlu0 %v936
    %v938 = vpop.xlane.xlu0 %937
    %v939 = vsel %vm256, %v935, 0.0
    %940 = vadd.xlane.f32.xlu0 %v939
    %v941 = vpop.xlane.xlu0 %940
    %v942 = vmul.f32 %v938, %v929
    %v943 = vmul.f32 %v941, %v929
    %v944 = vadd.f32 %v942, 1e-05
    %v945 = vadd.f32 %v943, 1e-05
    %v946 = vrsqrt.pop %v944
    %v947 = vmul.f32 %v946, %v944
    %v948 = vmul.f32 %v947, %v946
    %v949 = vmul.f32 0.5, %v948
    %v950 = vsub.f32 1.5, %v949
    %v951 = vmul.f32 %v946, %v950
    %vm952 = vweird.f32 %v944
    %vm953 = vweird.f32 %v946
    %vm954 = vmor %vm952, %vm953
    %v955 = vsel %vm954, %v946, %v951
    %v956 = vrsqrt.pop %v945
    %v957 = vmul.f32 %v956, %v945
    %v958 = vmul.f32 %v957, %v956
    %v959 = vmul.f32 0.5, %v958
    %v960 = vsub.f32 1.5, %v959
    %v961 = vmul.f32 %v956, %v960
    %vm962 = vweird.f32 %v945
    %vm963 = vweird.f32 %v956
    %vm964 = vmor %vm962, %vm963
    %v965 = vsel %vm964, %v956, %v961
    %v966 = vmul.f32 %v932, %v955
    %v967 = vmul.f32 %v933, %v965
    %v969 = vperm.slane %v915, 0
    %v971 = vmul.f32 %v966, %v969
    %v972 = vmul.f32 %v967, %v969
    %v974 = vperm.slane %v916, 0
    %v976 = vadd.f32 %v971, %v974
    %v977 = vadd.f32 %v972, %v974
    %v978 = vld [vmem:[%s8] sm:$0xf]
    %v979 = vld [vmem:[%s8 + $0x4] sm:$0xf]
    %v980 = vld [vmem:[%s8 + $0x8] sm:$0xf]
    %v981 = vld [vmem:[%s8 + $0xc] sm:$0xf]
    %v982 = vld [vmem:[#allocation7] sm:$0x1]
    %v983 = vpack.c.bf16 %v977, %v976
    %v985 = vperm.slane %v982, 0
    %v991 = vunpack.c.l.b16 %v978
    %v992 = vunpack.c.l.b16 %v979
    %v993 = vunpack.c.l.b16 %v980
    %v994 = vunpack.c.l.b16 %v981
    %v995 = vpack.c.b16 %v992, %v991
    %v996 = vpack.c.b16 %v994, %v993
    %v1000 = vsel %vm256, %v983, 0
    %1002 = vmatpush.bf16.msra.mxu0 0
    %1003 = vmatpush.bf16.msra.mxu0 0
    %1004 = vmatpush.bf16.msra.mxu0 0
    %1005 = vmatpush.bf16.msra.mxu0 0
    %1006 = vmatpush.bf16.msra.mxu0 0
    %1007 = vmatpush.bf16.msra.mxu0 0
    %1008 = vmatpush.bf16.msra.mxu0 %v996
    %1009 = vmatpush.bf16.msra.mxu0 %v995
    %1010 = vmatmul.bf16.gmra.mxu0 %v1000
    %v1011 = vpop.f32.mrf.mxu0
    %v1012 = vadd.f32 %v985, %v1011
    %v1013 = vpop.f32.mrf.mxu0
    %v1014 = vadd.f32 %v985, %v1013
    %1015 = vdwg.mxu0
    %v1016 = vmax.f32 %v1012, 0.0
    %v1017 = vmax.f32 %v1014, 0.0
    %v1018 = vld [vmem:[%s10] sm:$0xf]
    %v1019 = vld [vmem:[%s10 + $0x4] sm:$0xf]
    %v1020 = vld [vmem:[%s10 + $0x8] sm:$0xf]
    %v1021 = vld [vmem:[%s10 + $0xc] sm:$0xf]
    %v1022 = vld [vmem:[%s10 + $0x10] sm:$0xf]
    %v1023 = vld [vmem:[%s10 + $0x14] sm:$0xf]
    %v1024 = vld [vmem:[%s10 + $0x18] sm:$0xf]
    %v1025 = vld [vmem:[%s10 + $0x1c] sm:$0xf]
    %v1026 = vld [vmem:[#allocation9] sm:$0x1]
    %v1027 = vpack.c.bf16 %v1017, %v1016
    %v1029 = vperm.slane %v1026, 0
    %v1039 = vunpack.c.l.b16 %v1018
    %v1040 = vunpack.c.l.b16 %v1019
    %v1041 = vunpack.c.l.b16 %v1020
    %v1042 = vunpack.c.l.b16 %v1021
    %v1043 = vunpack.c.l.b16 %v1022
    %v1044 = vunpack.c.l.b16 %v1023
    %v1045 = vunpack.c.l.b16 %v1024
    %v1046 = vunpack.c.l.b16 %v1025
    %v1047 = vpack.c.b16 %v1040, %v1039
    %v1048 = vpack.c.b16 %v1042, %v1041
    %v1049 = vpack.c.b16 %v1044, %v1043
    %v1050 = vpack.c.b16 %v1046, %v1045
    %vm1055 = vcmask 523264
    %v1057 = vsel %vm1055, %v1027, 0
    %1059 = vmatpush.bf16.msra.mxu0 0
    %1060 = vmatpush.bf16.msra.mxu0 0
    %1061 = vmatpush.bf16.msra.mxu0 0
    %1062 = vmatpush.bf16.msra.mxu0 0
    %1063 = vmatpush.bf16.msra.mxu0 %v1050
    %1064 = vmatpush.bf16.msra.mxu0 %v1049
    %1065 = vmatpush.bf16.msra.mxu0 %v1048
    %1066 = vmatpush.bf16.msra.mxu0 %v1047
    %1067 = vmatmul.bf16.gmra.mxu0 %v1057
    %v1068 = vpop.f32.mrf.mxu0
    %v1069 = vadd.f32 %v1029, %v1068
    %v1070 = vpop.f32.mrf.mxu0
    %v1071 = vadd.f32 %v1029, %v1070
    %1072 = vdwg.mxu0
    %v1073 = vadd.f32 %v976, %v1069
    %v1074 = vadd.f32 %v977, %v1071
    %v1075 = vld [vmem:[#allocation13] sm:$0x1]
    %v1076 = vld [vmem:[#allocation15] sm:$0x1]
    %v1077 = vsel %vm256, %v1073, 0.0
    %1078 = vadd.xlane.f32.xlu0 %v1077
    %v1079 = vpop.xlane.xlu0 %1078
    %v1080 = vsel %vm256, %v1074, 0.0
    %1081 = vadd.xlane.f32.xlu0 %v1080
    %v1082 = vpop.xlane.xlu0 %1081
    %v1083 = vmul.f32 %v1079, %v929
    %v1084 = vmul.f32 %v1082, %v929
    %v1085 = vsub.f32 %v1073, %v1083
    %v1086 = vsub.f32 %v1074, %v1084
    %v1087 = vmul.f32 %v1085, %v1085
    %v1088 = vmul.f32 %v1086, %v1086
    %v1089 = vsel %vm256, %v1087, 0.0
    %1090 = vadd.xlane.f32.xlu0 %v1089
    %v1091 = vpop.xlane.xlu0 %1090
    %v1092 = vsel %vm256, %v1088, 0.0
    %1093 = vadd.xlane.f32.xlu0 %v1092
    %v1094 = vpop.xlane.xlu0 %1093
    %v1095 = vmul.f32 %v1091, %v929
    %v1096 = vmul.f32 %v1094, %v929
    %v1097 = vadd.f32 %v1095, 1e-05
    %v1098 = vadd.f32 %v1096, 1e-05
    %v1099 = vrsqrt.pop %v1097
    %v1100 = vmul.f32 %v1099, %v1097
    %v1101 = vmul.f32 %v1100, %v1099
    %v1102 = vmul.f32 0.5, %v1101
    %v1103 = vsub.f32 1.5, %v1102
    %v1104 = vmul.f32 %v1099, %v1103
    %vm1105 = vweird.f32 %v1097
    %vm1106 = vweird.f32 %v1099
    %vm1107 = vmor %vm1105, %vm1106
    %v1108 = vsel %vm1107, %v1099, %v1104
    %v1109 = vrsqrt.pop %v1098
    %v1110 = vmul.f32 %v1109, %v1098
    %v1111 = vmul.f32 %v1110, %v1109
    %v1112 = vmul.f32 0.5, %v1111
    %v1113 = vsub.f32 1.5, %v1112
    %v1114 = vmul.f32 %v1109, %v1113
    %vm1115 = vweird.f32 %v1098
    %vm1116 = vweird.f32 %v1109
    %vm1117 = vmor %vm1115, %vm1116
    %v1118 = vsel %vm1117, %v1109, %v1114
    %v1119 = vmul.f32 %v1085, %v1108
    %v1120 = vmul.f32 %v1086, %v1118
    %v1122 = vperm.slane %v1075, 0
    %v1124 = vmul.f32 %v1119, %v1122
    %v1125 = vmul.f32 %v1120, %v1122
    %v1127 = vperm.slane %v1076, 0
    %v1129 = vadd.f32 %v1124, %v1127
    %v1130 = vadd.f32 %v1125, %v1127
    %v1131 = vadd.f32 %v1129, %v231
    %v1132 = vadd.f32 %v1130, %v232
    %s1133 = scalar_lea.vmem %s2, 16
    %v1134 = vld [vmem:[%s1133] sm:$0xf]
    %v1135 = vld [vmem:[%s1133 + $0x4] sm:$0xf]
    %v1136 = vld [vmem:[%s1133 + $0x8] sm:$0xf]
    %v1137 = vld [vmem:[%s1133 + $0xc] sm:$0xf]
    %s1138 = scalar_lea.vmem [#allocation2], 1
    %v1139 = vld [vmem:[%s1138] sm:$0x1]
    %v1140 = vpack.c.bf16 %v1132, %v1131
    %v1142 = vperm.slane %v1139, 0
    %v1148 = vunpack.c.l.b16 %v1134
    %v1149 = vunpack.c.l.b16 %v1135
    %v1150 = vunpack.c.l.b16 %v1136
    %v1151 = vunpack.c.l.b16 %v1137
    %v1152 = vpack.c.b16 %v1149, %v1148
    %v1153 = vpack.c.b16 %v1151, %v1150
    %v1157 = vsel %vm256, %v1140, 0
    %1159 = vmatpush.bf16.msra.mxu0 0
    %1160 = vmatpush.bf16.msra.mxu0 0
    %1161 = vmatpush.bf16.msra.mxu0 0
    %1162 = vmatpush.bf16.msra.mxu0 0
    %1163 = vmatpush.bf16.msra.mxu0 0
    %1164 = vmatpush.bf16.msra.mxu0 0
    %1165 = vmatpush.bf16.msra.mxu0 %v1153
    %1166 = vmatpush.bf16.msra.mxu0 %v1152
    %1167 = vmatmul.bf16.gmra.mxu0 %v1157
    %v1168 = vpop.f32.mrf.mxu0
    %v1169 = vadd.f32 %v1142, %v1168
    %v1170 = vpop.f32.mrf.mxu0
    %v1171 = vadd.f32 %v1142, %v1170
    %1172 = vdwg.mxu0
    %s1173 = scalar_lea.vmem %s4, 16
    %v1174 = vld [vmem:[%s1173] sm:$0xf]
    %v1175 = vld [vmem:[%s1173 + $0x4] sm:$0xf]
    %v1176 = vld [vmem:[%s1173 + $0x8] sm:$0xf]
    %v1177 = vld [vmem:[%s1173 + $0xc] sm:$0xf]
    %s1178 = scalar_lea.vmem [#allocation4], 1
    %v1179 = vld [vmem:[%s1178] sm:$0x1]
    %v1180 = vpack.c.bf16 %v1130, %v1129
    %v1182 = vperm.slane %v1179, 0
    %v1188 = vunpack.c.l.b16 %v1174
    %v1189 = vunpack.c.l.b16 %v1175
    %v1190 = vunpack.c.l.b16 %v1176
    %v1191 = vunpack.c.l.b16 %v1177
    %v1192 = vpack.c.b16 %v1189, %v1188
    %v1193 = vpack.c.b16 %v1191, %v1190
    %v1197 = vsel %vm256, %v1180, 0
    %1199 = vmatpush.bf16.msra.mxu0 0
    %1200 = vmatpush.bf16.msra.mxu0 0
    %1201 = vmatpush.bf16.msra.mxu0 0
    %1202 = vmatpush.bf16.msra.mxu0 0
    %1203 = vmatpush.bf16.msra.mxu0 0
    %1204 = vmatpush.bf16.msra.mxu0 0
    %1205 = vmatpush.bf16.msra.mxu0 %v1193
    %1206 = vmatpush.bf16.msra.mxu0 %v1192
    %1207 = vmatmul.bf16.gmra.mxu0 %v1197
    %v1208 = vpop.f32.mrf.mxu0
    %v1209 = vadd.f32 %v1182, %v1208
    %v1210 = vpop.f32.mrf.mxu0
    %v1211 = vadd.f32 %v1182, %v1210
    %1212 = vdwg.mxu0
    %v1213 = vmul.f32 %v1169, 0.35355338
    %v1214 = vmul.f32 %v1171, 0.35355338
    %1217 = vrot.lane.b32.xlu0 %v1213, 120
    %v1218 = vpop.permute.xlu0 %1217
    %1219 = vrot.lane.b32.xlu0 %v1214, 120
    %v1220 = vpop.permute.xlu0 %1219
    %1221 = vrot.lane.b32.xlu0 %v1213, 112
    %v1222 = vpop.permute.xlu0 %1221
    %1223 = vrot.lane.b32.xlu0 %v1214, 112
    %v1224 = vpop.permute.xlu0 %1223
    %1225 = vrot.lane.b32.xlu0 %v1213, 104
    %v1226 = vpop.permute.xlu0 %1225
    %1227 = vrot.lane.b32.xlu0 %v1214, 104
    %v1228 = vpop.permute.xlu0 %1227
    %1231 = vrot.lane.b32.xlu0 %v1169, 120
    %v1232 = vpop.permute.xlu0 %1231
    %1233 = vrot.lane.b32.xlu0 %v1171, 120
    %v1234 = vpop.permute.xlu0 %1233
    %1235 = vrot.lane.b32.xlu0 %v1169, 112
    %v1236 = vpop.permute.xlu0 %1235
    %1237 = vrot.lane.b32.xlu0 %v1171, 112
    %v1238 = vpop.permute.xlu0 %1237
    %1239 = vrot.lane.b32.xlu0 %v1169, 104
    %v1240 = vpop.permute.xlu0 %1239
    %1241 = vrot.lane.b32.xlu0 %v1171, 104
    %v1242 = vpop.permute.xlu0 %1241
    %1245 = vrot.lane.b32.xlu0 %v1209, 120
    %v1246 = vpop.permute.xlu0 %1245
    %1247 = vrot.lane.b32.xlu0 %v1211, 120
    %v1248 = vpop.permute.xlu0 %1247
    %1251 = vrot.lane.b32.xlu0 %v1209, 112
    %v1252 = vpop.permute.xlu0 %1251
    %1253 = vrot.lane.b32.xlu0 %v1211, 112
    %v1254 = vpop.permute.xlu0 %1253
    %1257 = vrot.lane.b32.xlu0 %v1209, 104
    %v1258 = vpop.permute.xlu0 %1257
    %1259 = vrot.lane.b32.xlu0 %v1211, 104
    %v1260 = vpop.permute.xlu0 %1259
    %1263 = vrot.lane.b32.xlu0 %v1169, 96
    %v1264 = vpop.permute.xlu0 %1263
    %v1265 = vsel %vm364, %v1213, 0
    %v1267 = vsel %vm364, %v1264, 0
    %1269 = vmatpush.xpose.msra.mxu0 0.0
    %1270 = vmatpush.xpose.msra.mxu0 0.0
    %1271 = vmatpush.xpose.msra.mxu0 0.0
    %1272 = vmatpush.xpose.msra.mxu0 0.0
    %1273 = vmatpush.xpose.msra.mxu0 0.0
    %1274 = vmatpush.xpose.msra.mxu0 0.0
    %1275 = vmatpush.xpose.msra.mxu0 0.0
    %1276 = vmatpush.xpose.msra.mxu0 0.0
    %1277 = vmatpush.xpose.msra.mxu0 0.0
    %1278 = vmatpush.xpose.msra.mxu0 0.0
    %1279 = vmatpush.xpose.msra.mxu0 0.0
    %1280 = vmatpush.xpose.msra.mxu0 0.0
    %1281 = vmatpush.xpose.msra.mxu0 0.0
    %1282 = vmatpush.xpose.msra.mxu0 0.0
    %1283 = vmatpush.xpose.msra.mxu0 0.0
    %1284 = vmatpush.xpose.msra.mxu0 %v1267
    %1285 = vmatmul.f32.gmra.mxu0 %v1265
    %v1286 = vpop.f32.mrf.mxu0
    %v1287 = vadd.f32 0.0, %v1286
    %1288 = vdwg.mxu0
    %1289 = vrot.lane.b32.xlu0 %v1171, 96
    %v1290 = vpop.permute.xlu0 %1289
    %v1291 = vsel %vm364, %v1214, 0
    %v1293 = vsel %vm364, %v1290, 0
    %1295 = vmatpush.xpose.msra.mxu0 0.0
    %1296 = vmatpush.xpose.msra.mxu0 0.0
    %1297 = vmatpush.xpose.msra.mxu0 0.0
    %1298 = vmatpush.xpose.msra.mxu0 0.0
    %1299 = vmatpush.xpose.msra.mxu0 0.0
    %1300 = vmatpush.xpose.msra.mxu0 0.0
    %1301 = vmatpush.xpose.msra.mxu0 0.0
    %1302 = vmatpush.xpose.msra.mxu0 0.0
    %1303 = vmatpush.xpose.msra.mxu0 0.0
    %1304 = vmatpush.xpose.msra.mxu0 0.0
    %1305 = vmatpush.xpose.msra.mxu0 0.0
    %1306 = vmatpush.xpose.msra.mxu0 0.0
    %1307 = vmatpush.xpose.msra.mxu0 0.0
    %1308 = vmatpush.xpose.msra.mxu0 0.0
    %1309 = vmatpush.xpose.msra.mxu0 0.0
    %1310 = vmatpush.xpose.msra.mxu0 %v1293
    %1311 = vmatmul.f32.gmra.mxu0 %v1291
    %v1312 = vpop.f32.mrf.mxu0
    %v1313 = vadd.f32 0.0, %v1312
    %1314 = vdwg.mxu0
    %1315 = vrot.lane.b32.xlu0 %v1232, 96
    %v1316 = vpop.permute.xlu0 %1315
    %v1317 = vsel %vm364, %v1218, 0
    %v1319 = vsel %vm364, %v1316, 0
    %1321 = vmatpush.xpose.msra.mxu0 0.0
    %1322 = vmatpush.xpose.msra.mxu0 0.0
    %1323 = vmatpush.xpose.msra.mxu0 0.0
    %1324 = vmatpush.xpose.msra.mxu0 0.0
    %1325 = vmatpush.xpose.msra.mxu0 0.0
    %1326 = vmatpush.xpose.msra.mxu0 0.0
    %1327 = vmatpush.xpose.msra.mxu0 0.0
    %1328 = vmatpush.xpose.msra.mxu0 0.0
    %1329 = vmatpush.xpose.msra.mxu0 0.0
    %1330 = vmatpush.xpose.msra.mxu0 0.0
    %1331 = vmatpush.xpose.msra.mxu0 0.0
    %1332 = vmatpush.xpose.msra.mxu0 0.0
    %1333 = vmatpush.xpose.msra.mxu0 0.0
    %1334 = vmatpush.xpose.msra.mxu0 0.0
    %1335 = vmatpush.xpose.msra.mxu0 0.0
    %1336 = vmatpush.xpose.msra.mxu0 %v1319
    %1337 = vmatmul.f32.gmra.mxu0 %v1317
    %v1338 = vpop.f32.mrf.mxu0
    %v1339 = vadd.f32 0.0, %v1338
    %1340 = vdwg.mxu0
    %1341 = vrot.lane.b32.xlu0 %v1234, 96
    %v1342 = vpop.permute.xlu0 %1341
    %v1343 = vsel %vm364, %v1220, 0
    %v1345 = vsel %vm364, %v1342, 0
    %1347 = vmatpush.xpose.msra.mxu0 0.0
    %1348 = vmatpush.xpose.msra.mxu0 0.0
    %1349 = vmatpush.xpose.msra.mxu0 0.0
    %1350 = vmatpush.xpose.msra.mxu0 0.0
    %1351 = vmatpush.xpose.msra.mxu0 0.0
    %1352 = vmatpush.xpose.msra.mxu0 0.0
    %1353 = vmatpush.xpose.msra.mxu0 0.0
    %1354 = vmatpush.xpose.msra.mxu0 0.0
    %1355 = vmatpush.xpose.msra.mxu0 0.0
    %1356 = vmatpush.xpose.msra.mxu0 0.0
    %1357 = vmatpush.xpose.msra.mxu0 0.0
    %1358 = vmatpush.xpose.msra.mxu0 0.0
    %1359 = vmatpush.xpose.msra.mxu0 0.0
    %1360 = vmatpush.xpose.msra.mxu0 0.0
    %1361 = vmatpush.xpose.msra.mxu0 0.0
    %1362 = vmatpush.xpose.msra.mxu0 %v1345
    %1363 = vmatmul.f32.gmra.mxu0 %v1343
    %v1364 = vpop.f32.mrf.mxu0
    %v1365 = vadd.f32 0.0, %v1364
    %1366 = vdwg.mxu0
    %1367 = vrot.lane.b32.xlu0 %v1236, 96
    %v1368 = vpop.permute.xlu0 %1367
    %v1369 = vsel %vm364, %v1222, 0
    %v1371 = vsel %vm364, %v1368, 0
    %1373 = vmatpush.xpose.msra.mxu0 0.0
    %1374 = vmatpush.xpose.msra.mxu0 0.0
    %1375 = vmatpush.xpose.msra.mxu0 0.0
    %1376 = vmatpush.xpose.msra.mxu0 0.0
    %1377 = vmatpush.xpose.msra.mxu0 0.0
    %1378 = vmatpush.xpose.msra.mxu0 0.0
    %1379 = vmatpush.xpose.msra.mxu0 0.0
    %1380 = vmatpush.xpose.msra.mxu0 0.0
    %1381 = vmatpush.xpose.msra.mxu0 0.0
    %1382 = vmatpush.xpose.msra.mxu0 0.0
    %1383 = vmatpush.xpose.msra.mxu0 0.0
    %1384 = vmatpush.xpose.msra.mxu0 0.0
    %1385 = vmatpush.xpose.msra.mxu0 0.0
    %1386 = vmatpush.xpose.msra.mxu0 0.0
    %1387 = vmatpush.xpose.msra.mxu0 0.0
    %1388 = vmatpush.xpose.msra.mxu0 %v1371
    %1389 = vmatmul.f32.gmra.mxu0 %v1369
    %v1390 = vpop.f32.mrf.mxu0
    %v1391 = vadd.f32 0.0, %v1390
    %1392 = vdwg.mxu0
    %1393 = vrot.lane.b32.xlu0 %v1238, 96
    %v1394 = vpop.permute.xlu0 %1393
    %v1395 = vsel %vm364, %v1224, 0
    %v1397 = vsel %vm364, %v1394, 0
    %1399 = vmatpush.xpose.msra.mxu0 0.0
    %1400 = vmatpush.xpose.msra.mxu0 0.0
    %1401 = vmatpush.xpose.msra.mxu0 0.0
    %1402 = vmatpush.xpose.msra.mxu0 0.0
    %1403 = vmatpush.xpose.msra.mxu0 0.0
    %1404 = vmatpush.xpose.msra.mxu0 0.0
    %1405 = vmatpush.xpose.msra.mxu0 0.0
    %1406 = vmatpush.xpose.msra.mxu0 0.0
    %1407 = vmatpush.xpose.msra.mxu0 0.0
    %1408 = vmatpush.xpose.msra.mxu0 0.0
    %1409 = vmatpush.xpose.msra.mxu0 0.0
    %1410 = vmatpush.xpose.msra.mxu0 0.0
    %1411 = vmatpush.xpose.msra.mxu0 0.0
    %1412 = vmatpush.xpose.msra.mxu0 0.0
    %1413 = vmatpush.xpose.msra.mxu0 0.0
    %1414 = vmatpush.xpose.msra.mxu0 %v1397
    %1415 = vmatmul.f32.gmra.mxu0 %v1395
    %v1416 = vpop.f32.mrf.mxu0
    %v1417 = vadd.f32 0.0, %v1416
    %1418 = vdwg.mxu0
    %1419 = vrot.lane.b32.xlu0 %v1240, 96
    %v1420 = vpop.permute.xlu0 %1419
    %v1421 = vsel %vm364, %v1226, 0
    %v1423 = vsel %vm364, %v1420, 0
    %1425 = vmatpush.xpose.msra.mxu0 0.0
    %1426 = vmatpush.xpose.msra.mxu0 0.0
    %1427 = vmatpush.xpose.msra.mxu0 0.0
    %1428 = vmatpush.xpose.msra.mxu0 0.0
    %1429 = vmatpush.xpose.msra.mxu0 0.0
    %1430 = vmatpush.xpose.msra.mxu0 0.0
    %1431 = vmatpush.xpose.msra.mxu0 0.0
    %1432 = vmatpush.xpose.msra.mxu0 0.0
    %1433 = vmatpush.xpose.msra.mxu0 0.0
    %1434 = vmatpush.xpose.msra.mxu0 0.0
    %1435 = vmatpush.xpose.msra.mxu0 0.0
    %1436 = vmatpush.xpose.msra.mxu0 0.0
    %1437 = vmatpush.xpose.msra.mxu0 0.0
    %1438 = vmatpush.xpose.msra.mxu0 0.0
    %1439 = vmatpush.xpose.msra.mxu0 0.0
    %1440 = vmatpush.xpose.msra.mxu0 %v1423
    %1441 = vmatmul.f32.gmra.mxu0 %v1421
    %v1442 = vpop.f32.mrf.mxu0
    %v1443 = vadd.f32 0.0, %v1442
    %1444 = vdwg.mxu0
    %1445 = vrot.lane.b32.xlu0 %v1242, 96
    %v1446 = vpop.permute.xlu0 %1445
    %v1447 = vsel %vm364, %v1228, 0
    %v1449 = vsel %vm364, %v1446, 0
    %1451 = vmatpush.xpose.msra.mxu0 0.0
    %1452 = vmatpush.xpose.msra.mxu0 0.0
    %1453 = vmatpush.xpose.msra.mxu0 0.0
    %1454 = vmatpush.xpose.msra.mxu0 0.0
    %1455 = vmatpush.xpose.msra.mxu0 0.0
    %1456 = vmatpush.xpose.msra.mxu0 0.0
    %1457 = vmatpush.xpose.msra.mxu0 0.0
    %1458 = vmatpush.xpose.msra.mxu0 0.0
    %1459 = vmatpush.xpose.msra.mxu0 0.0
    %1460 = vmatpush.xpose.msra.mxu0 0.0
    %1461 = vmatpush.xpose.msra.mxu0 0.0
    %1462 = vmatpush.xpose.msra.mxu0 0.0
    %1463 = vmatpush.xpose.msra.mxu0 0.0
    %1464 = vmatpush.xpose.msra.mxu0 0.0
    %1465 = vmatpush.xpose.msra.mxu0 0.0
    %1466 = vmatpush.xpose.msra.mxu0 %v1449
    %1467 = vmatmul.f32.gmra.mxu0 %v1447
    %v1468 = vpop.f32.mrf.mxu0
    %v1469 = vadd.f32 0.0, %v1468
    %1470 = vdwg.mxu0
    %v1471 = vsel %vm364, %v1287, -inf
    %1472 = vmax.xlane.f32.xlu0 %v1471
    %v1473 = vpop.xlane.xlu0 %1472
    %v1474 = vsel %vm364, %v1313, -inf
    %1475 = vmax.xlane.f32.xlu0 %v1474
    %v1476 = vpop.xlane.xlu0 %1475
    %v1477 = vsel %vm364, %v1339, -inf
    %1478 = vmax.xlane.f32.xlu0 %v1477
    %v1479 = vpop.xlane.xlu0 %1478
    %v1480 = vsel %vm364, %v1365, -inf
    %1481 = vmax.xlane.f32.xlu0 %v1480
    %v1482 = vpop.xlane.xlu0 %1481
    %v1483 = vsel %vm364, %v1391, -inf
    %1484 = vmax.xlane.f32.xlu0 %v1483
    %v1485 = vpop.xlane.xlu0 %1484
    %v1486 = vsel %vm364, %v1417, -inf
    %1487 = vmax.xlane.f32.xlu0 %v1486
    %v1488 = vpop.xlane.xlu0 %1487
    %v1489 = vsel %vm364, %v1443, -inf
    %1490 = vmax.xlane.f32.xlu0 %v1489
    %v1491 = vpop.xlane.xlu0 %1490
    %v1492 = vsel %vm364, %v1469, -inf
    %1493 = vmax.xlane.f32.xlu0 %v1492
    %v1494 = vpop.xlane.xlu0 %1493
    %v1495 = vsub.f32 %v1287, %v1473
    %v1496 = vsub.f32 %v1313, %v1476
    %v1497 = vsub.f32 %v1339, %v1479
    %v1498 = vsub.f32 %v1365, %v1482
    %v1499 = vsub.f32 %v1391, %v1485
    %v1500 = vsub.f32 %v1417, %v1488
    %v1501 = vsub.f32 %v1443, %v1491
    %v1502 = vsub.f32 %v1469, %v1494
    %v1503 = vmul.f32 %v1495, 1.442695
    %v1504 = vpow.pop %v1503
    %v1505 = vmul.f32 %v1496, 1.442695
    %v1506 = vpow.pop %v1505
    %v1507 = vmul.f32 %v1497, 1.442695
    %v1508 = vpow.pop %v1507
    %v1509 = vmul.f32 %v1498, 1.442695
    %v1510 = vpow.pop %v1509
    %v1511 = vmul.f32 %v1499, 1.442695
    %v1512 = vpow.pop %v1511
    %v1513 = vmul.f32 %v1500, 1.442695
    %v1514 = vpow.pop %v1513
    %v1515 = vmul.f32 %v1501, 1.442695
    %v1516 = vpow.pop %v1515
    %v1517 = vmul.f32 %v1502, 1.442695
    %v1518 = vpow.pop %v1517
    %v1519 = vsel %vm364, %v1504, 0.0
    %1520 = vadd.xlane.f32.xlu0 %v1519
    %v1521 = vpop.xlane.xlu0 %1520
    %v1522 = vsel %vm364, %v1506, 0.0
    %1523 = vadd.xlane.f32.xlu0 %v1522
    %v1524 = vpop.xlane.xlu0 %1523
    %v1525 = vsel %vm364, %v1508, 0.0
    %1526 = vadd.xlane.f32.xlu0 %v1525
    %v1527 = vpop.xlane.xlu0 %1526
    %v1528 = vsel %vm364, %v1510, 0.0
    %1529 = vadd.xlane.f32.xlu0 %v1528
    %v1530 = vpop.xlane.xlu0 %1529
    %v1531 = vsel %vm364, %v1512, 0.0
    %1532 = vadd.xlane.f32.xlu0 %v1531
    %v1533 = vpop.xlane.xlu0 %1532
    %v1534 = vsel %vm364, %v1514, 0.0
    %1535 = vadd.xlane.f32.xlu0 %v1534
    %v1536 = vpop.xlane.xlu0 %1535
    %v1537 = vsel %vm364, %v1516, 0.0
    %1538 = vadd.xlane.f32.xlu0 %v1537
    %v1539 = vpop.xlane.xlu0 %1538
    %v1540 = vsel %vm364, %v1518, 0.0
    %1541 = vadd.xlane.f32.xlu0 %v1540
    %v1542 = vpop.xlane.xlu0 %1541
    %v1543 = vrcp.pop %v1521
    %v1544 = vrcp.pop %v1524
    %v1545 = vrcp.pop %v1527
    %v1546 = vrcp.pop %v1530
    %v1547 = vrcp.pop %v1533
    %v1548 = vrcp.pop %v1536
    %v1549 = vrcp.pop %v1539
    %v1550 = vrcp.pop %v1542
    %v1551 = vmul.f32 %v1504, %v1543
    %v1552 = vmul.f32 %v1506, %v1544
    %v1553 = vmul.f32 %v1508, %v1545
    %v1554 = vmul.f32 %v1510, %v1546
    %v1555 = vmul.f32 %v1512, %v1547
    %v1556 = vmul.f32 %v1514, %v1548
    %v1557 = vmul.f32 %v1516, %v1549
    %v1558 = vmul.f32 %v1518, %v1550
    %v1560 = vsel %vm364, %v1551, 0
    %1562 = vmatpush.msra.mxu0 0.0
    %1563 = vmatpush.msra.mxu0 0.0
    %1564 = vmatpush.msra.mxu0 0.0
    %1565 = vmatpush.msra.mxu0 0.0
    %1566 = vmatpush.msra.mxu0 0.0
    %1567 = vmatpush.msra.mxu0 0.0
    %1568 = vmatpush.msra.mxu0 0.0
    %1569 = vmatpush.msra.mxu0 0.0
    %1570 = vmatpush.msra.mxu0 0.0
    %1571 = vmatpush.msra.mxu0 0.0
    %1572 = vmatpush.msra.mxu0 0.0
    %1573 = vmatpush.msra.mxu0 0.0
    %1574 = vmatpush.msra.mxu0 0.0
    %1575 = vmatpush.msra.mxu0 0.0
    %1576 = vmatpush.msra.mxu0 0.0
    %1577 = vmatpush.msra.mxu0 %v1209
    %1578 = vmatmul.f32.gmra.mxu0 %v1560
    %v1579 = vpop.f32.mrf.mxu0
    %v1580 = vadd.f32 0.0, %v1579
    %1581 = vdwg.mxu0
    %v1583 = vsel %vm364, %v1552, 0
    %1585 = vmatpush.msra.mxu0 0.0
    %1586 = vmatpush.msra.mxu0 0.0
    %1587 = vmatpush.msra.mxu0 0.0
    %1588 = vmatpush.msra.mxu0 0.0
    %1589 = vmatpush.msra.mxu0 0.0
    %1590 = vmatpush.msra.mxu0 0.0
    %1591 = vmatpush.msra.mxu0 0.0
    %1592 = vmatpush.msra.mxu0 0.0
    %1593 = vmatpush.msra.mxu0 0.0
    %1594 = vmatpush.msra.mxu0 0.0
    %1595 = vmatpush.msra.mxu0 0.0
    %1596 = vmatpush.msra.mxu0 0.0
    %1597 = vmatpush.msra.mxu0 0.0
    %1598 = vmatpush.msra.mxu0 0.0
    %1599 = vmatpush.msra.mxu0 0.0
    %1600 = vmatpush.msra.mxu0 %v1211
    %1601 = vmatmul.f32.gmra.mxu0 %v1583
    %v1602 = vpop.f32.mrf.mxu0
    %v1603 = vadd.f32 0.0, %v1602
    %1604 = vdwg.mxu0
    %v1606 = vsel %vm364, %v1553, 0
    %1608 = vmatpush.msra.mxu0 0.0
    %1609 = vmatpush.msra.mxu0 0.0
    %1610 = vmatpush.msra.mxu0 0.0
    %1611 = vmatpush.msra.mxu0 0.0
    %1612 = vmatpush.msra.mxu0 0.0
    %1613 = vmatpush.msra.mxu0 0.0
    %1614 = vmatpush.msra.mxu0 0.0
    %1615 = vmatpush.msra.mxu0 0.0
    %1616 = vmatpush.msra.mxu0 0.0
    %1617 = vmatpush.msra.mxu0 0.0
    %1618 = vmatpush.msra.mxu0 0.0
    %1619 = vmatpush.msra.mxu0 0.0
    %1620 = vmatpush.msra.mxu0 0.0
    %1621 = vmatpush.msra.mxu0 0.0
    %1622 = vmatpush.msra.mxu0 0.0
    %1623 = vmatpush.msra.mxu0 %v1246
    %1624 = vmatmul.f32.gmra.mxu0 %v1606
    %v1625 = vpop.f32.mrf.mxu0
    %v1626 = vadd.f32 0.0, %v1625
    %1627 = vdwg.mxu0
    %v1629 = vsel %vm364, %v1554, 0
    %1631 = vmatpush.msra.mxu0 0.0
    %1632 = vmatpush.msra.mxu0 0.0
    %1633 = vmatpush.msra.mxu0 0.0
    %1634 = vmatpush.msra.mxu0 0.0
    %1635 = vmatpush.msra.mxu0 0.0
    %1636 = vmatpush.msra.mxu0 0.0
    %1637 = vmatpush.msra.mxu0 0.0
    %1638 = vmatpush.msra.mxu0 0.0
    %1639 = vmatpush.msra.mxu0 0.0
    %1640 = vmatpush.msra.mxu0 0.0
    %1641 = vmatpush.msra.mxu0 0.0
    %1642 = vmatpush.msra.mxu0 0.0
    %1643 = vmatpush.msra.mxu0 0.0
    %1644 = vmatpush.msra.mxu0 0.0
    %1645 = vmatpush.msra.mxu0 0.0
    %1646 = vmatpush.msra.mxu0 %v1248
    %1647 = vmatmul.f32.gmra.mxu0 %v1629
    %v1648 = vpop.f32.mrf.mxu0
    %v1649 = vadd.f32 0.0, %v1648
    %1650 = vdwg.mxu0
    %v1652 = vsel %vm364, %v1555, 0
    %1654 = vmatpush.msra.mxu0 0.0
    %1655 = vmatpush.msra.mxu0 0.0
    %1656 = vmatpush.msra.mxu0 0.0
    %1657 = vmatpush.msra.mxu0 0.0
    %1658 = vmatpush.msra.mxu0 0.0
    %1659 = vmatpush.msra.mxu0 0.0
    %1660 = vmatpush.msra.mxu0 0.0
    %1661 = vmatpush.msra.mxu0 0.0
    %1662 = vmatpush.msra.mxu0 0.0
    %1663 = vmatpush.msra.mxu0 0.0
    %1664 = vmatpush.msra.mxu0 0.0
    %1665 = vmatpush.msra.mxu0 0.0
    %1666 = vmatpush.msra.mxu0 0.0
    %1667 = vmatpush.msra.mxu0 0.0
    %1668 = vmatpush.msra.mxu0 0.0
    %1669 = vmatpush.msra.mxu0 %v1252
    %1670 = vmatmul.f32.gmra.mxu0 %v1652
    %v1671 = vpop.f32.mrf.mxu0
    %v1672 = vadd.f32 0.0, %v1671
    %1673 = vdwg.mxu0
    %v1675 = vsel %vm364, %v1556, 0
    %1677 = vmatpush.msra.mxu0 0.0
    %1678 = vmatpush.msra.mxu0 0.0
    %1679 = vmatpush.msra.mxu0 0.0
    %1680 = vmatpush.msra.mxu0 0.0
    %1681 = vmatpush.msra.mxu0 0.0
    %1682 = vmatpush.msra.mxu0 0.0
    %1683 = vmatpush.msra.mxu0 0.0
    %1684 = vmatpush.msra.mxu0 0.0
    %1685 = vmatpush.msra.mxu0 0.0
    %1686 = vmatpush.msra.mxu0 0.0
    %1687 = vmatpush.msra.mxu0 0.0
    %1688 = vmatpush.msra.mxu0 0.0
    %1689 = vmatpush.msra.mxu0 0.0
    %1690 = vmatpush.msra.mxu0 0.0
    %1691 = vmatpush.msra.mxu0 0.0
    %1692 = vmatpush.msra.mxu0 %v1254
    %1693 = vmatmul.f32.gmra.mxu0 %v1675
    %v1694 = vpop.f32.mrf.mxu0
    %v1695 = vadd.f32 0.0, %v1694
    %1696 = vdwg.mxu0
    %v1698 = vsel %vm364, %v1557, 0
    %1700 = vmatpush.msra.mxu0 0.0
    %1701 = vmatpush.msra.mxu0 0.0
    %1702 = vmatpush.msra.mxu0 0.0
    %1703 = vmatpush.msra.mxu0 0.0
    %1704 = vmatpush.msra.mxu0 0.0
    %1705 = vmatpush.msra.mxu0 0.0
    %1706 = vmatpush.msra.mxu0 0.0
    %1707 = vmatpush.msra.mxu0 0.0
    %1708 = vmatpush.msra.mxu0 0.0
    %1709 = vmatpush.msra.mxu0 0.0
    %1710 = vmatpush.msra.mxu0 0.0
    %1711 = vmatpush.msra.mxu0 0.0
    %1712 = vmatpush.msra.mxu0 0.0
    %1713 = vmatpush.msra.mxu0 0.0
    %1714 = vmatpush.msra.mxu0 0.0
    %1715 = vmatpush.msra.mxu0 %v1258
    %1716 = vmatmul.f32.gmra.mxu0 %v1698
    %v1717 = vpop.f32.mrf.mxu0
    %v1718 = vadd.f32 0.0, %v1717
    %1719 = vdwg.mxu0
    %v1721 = vsel %vm364, %v1558, 0
    %1723 = vmatpush.msra.mxu0 0.0
    %1724 = vmatpush.msra.mxu0 0.0
    %1725 = vmatpush.msra.mxu0 0.0
    %1726 = vmatpush.msra.mxu0 0.0
    %1727 = vmatpush.msra.mxu0 0.0
    %1728 = vmatpush.msra.mxu0 0.0
    %1729 = vmatpush.msra.mxu0 0.0
    %1730 = vmatpush.msra.mxu0 0.0
    %1731 = vmatpush.msra.mxu0 0.0
    %1732 = vmatpush.msra.mxu0 0.0
    %1733 = vmatpush.msra.mxu0 0.0
    %1734 = vmatpush.msra.mxu0 0.0
    %1735 = vmatpush.msra.mxu0 0.0
    %1736 = vmatpush.msra.mxu0 0.0
    %1737 = vmatpush.msra.mxu0 0.0
    %1738 = vmatpush.msra.mxu0 %v1260
    %1739 = vmatmul.f32.gmra.mxu0 %v1721
    %v1740 = vpop.f32.mrf.mxu0
    %v1741 = vadd.f32 0.0, %v1740
    %1742 = vdwg.mxu0
    %1745 = vrot.lane.b32.xlu0 %v1626, 8
    %v1746 = vpop.permute.xlu0 %1745
    %1747 = vrot.lane.b32.xlu0 %v1649, 8
    %v1748 = vpop.permute.xlu0 %1747
    %1753 = vrot.lane.b32.xlu0 %v1672, 16
    %v1754 = vpop.permute.xlu0 %1753
    %1755 = vrot.lane.b32.xlu0 %v1695, 16
    %v1756 = vpop.permute.xlu0 %1755
    %1761 = vrot.lane.b32.xlu0 %v1718, 24
    %v1762 = vpop.permute.xlu0 %1761
    %1763 = vrot.lane.b32.xlu0 %v1741, 24
    %v1764 = vpop.permute.xlu0 %1763
    %v1767 = vsel %vm364, %v1580, %v1746
    %v1768 = vsel %vm364, %v1603, %v1748
    %v1769 = vsel %vm869, %v1767, %v1754
    %v1770 = vsel %vm869, %v1768, %v1756
    %v1771 = vsel %vm872, %v1769, %v1762
    %v1772 = vsel %vm872, %v1770, %v1764
    %s1773 = scalar_lea.vmem %s6, 16
    %v1774 = vld [vmem:[%s1773] sm:$0xf]
    %v1775 = vld [vmem:[%s1773 + $0x4] sm:$0xf]
    %v1776 = vld [vmem:[%s1773 + $0x8] sm:$0xf]
    %v1777 = vld [vmem:[%s1773 + $0xc] sm:$0xf]
    %s1778 = scalar_lea.vmem [#allocation6], 1
    %v1779 = vld [vmem:[%s1778] sm:$0x1]
    %v1780 = vpack.c.bf16 %v1772, %v1771
    %v1782 = vperm.slane %v1779, 0
    %v1788 = vunpack.c.l.b16 %v1774
    %v1789 = vunpack.c.l.b16 %v1775
    %v1790 = vunpack.c.l.b16 %v1776
    %v1791 = vunpack.c.l.b16 %v1777
    %v1792 = vpack.c.b16 %v1789, %v1788
    %v1793 = vpack.c.b16 %v1791, %v1790
    %v1797 = vsel %vm256, %v1780, 0
    %1799 = vmatpush.bf16.msra.mxu0 0
    %1800 = vmatpush.bf16.msra.mxu0 0
    %1801 = vmatpush.bf16.msra.mxu0 0
    %1802 = vmatpush.bf16.msra.mxu0 0
    %1803 = vmatpush.bf16.msra.mxu0 0
    %1804 = vmatpush.bf16.msra.mxu0 0
    %1805 = vmatpush.bf16.msra.mxu0 %v1793
    %1806 = vmatpush.bf16.msra.mxu0 %v1792
    %1807 = vmatmul.bf16.gmra.mxu0 %v1797
    %v1808 = vpop.f32.mrf.mxu0
    %v1809 = vadd.f32 %v1782, %v1808
    %v1810 = vpop.f32.mrf.mxu0
    %v1811 = vadd.f32 %v1782, %v1810
    %1812 = vdwg.mxu0
    %v1813 = vadd.f32 %v1129, %v1809
    %v1814 = vadd.f32 %v1130, %v1811
    %s1815 = scalar_lea.vmem [#allocation10], 1
    %v1816 = vld [vmem:[%s1815] sm:$0x1]
    %s1817 = scalar_lea.vmem [#allocation12], 1
    %v1818 = vld [vmem:[%s1817] sm:$0x1]
    %v1819 = vsel %vm256, %v1813, 0.0
    %1820 = vadd.xlane.f32.xlu0 %v1819
    %v1821 = vpop.xlane.xlu0 %1820
    %v1822 = vsel %vm256, %v1814, 0.0
    %1823 = vadd.xlane.f32.xlu0 %v1822
    %v1824 = vpop.xlane.xlu0 %1823
    %v1825 = vmul.f32 %v1821, %v929
    %v1826 = vmul.f32 %v1824, %v929
    %v1827 = vsub.f32 %v1813, %v1825
    %v1828 = vsub.f32 %v1814, %v1826
    %v1829 = vmul.f32 %v1827, %v1827
    %v1830 = vmul.f32 %v1828, %v1828
    %v1831 = vsel %vm256, %v1829, 0.0
    %1832 = vadd.xlane.f32.xlu0 %v1831
    %v1833 = vpop.xlane.xlu0 %1832
    %v1834 = vsel %vm256, %v1830, 0.0
    %1835 = vadd.xlane.f32.xlu0 %v1834
    %v1836 = vpop.xlane.xlu0 %1835
    %v1837 = vmul.f32 %v1833, %v929
    %v1838 = vmul.f32 %v1836, %v929
    %v1839 = vadd.f32 %v1837, 1e-05
    %v1840 = vadd.f32 %v1838, 1e-05
    %v1841 = vrsqrt.pop %v1839
    %v1842 = vmul.f32 %v1841, %v1839
    %v1843 = vmul.f32 %v1842, %v1841
    %v1844 = vmul.f32 0.5, %v1843
    %v1845 = vsub.f32 1.5, %v1844
    %v1846 = vmul.f32 %v1841, %v1845
    %vm1847 = vweird.f32 %v1839
    %vm1848 = vweird.f32 %v1841
    %vm1849 = vmor %vm1847, %vm1848
    %v1850 = vsel %vm1849, %v1841, %v1846
    %v1851 = vrsqrt.pop %v1840
    %v1852 = vmul.f32 %v1851, %v1840
    %v1853 = vmul.f32 %v1852, %v1851
    %v1854 = vmul.f32 0.5, %v1853
    %v1855 = vsub.f32 1.5, %v1854
    %v1856 = vmul.f32 %v1851, %v1855
    %vm1857 = vweird.f32 %v1840
    %vm1858 = vweird.f32 %v1851
    %vm1859 = vmor %vm1857, %vm1858
    %v1860 = vsel %vm1859, %v1851, %v1856
    %v1861 = vmul.f32 %v1827, %v1850
    %v1862 = vmul.f32 %v1828, %v1860
    %v1864 = vperm.slane %v1816, 0
    %v1866 = vmul.f32 %v1861, %v1864
    %v1867 = vmul.f32 %v1862, %v1864
    %v1869 = vperm.slane %v1818, 0
    %v1871 = vadd.f32 %v1866, %v1869
    %v1872 = vadd.f32 %v1867, %v1869
    %s1873 = scalar_lea.vmem %s8, 16
    %v1874 = vld [vmem:[%s1873] sm:$0xf]
    %v1875 = vld [vmem:[%s1873 + $0x4] sm:$0xf]
    %v1876 = vld [vmem:[%s1873 + $0x8] sm:$0xf]
    %v1877 = vld [vmem:[%s1873 + $0xc] sm:$0xf]
    %s1878 = scalar_lea.vmem [#allocation7], 1
    %v1879 = vld [vmem:[%s1878] sm:$0x1]
    %v1880 = vpack.c.bf16 %v1872, %v1871
    %v1882 = vperm.slane %v1879, 0
    %v1888 = vunpack.c.l.b16 %v1874
    %v1889 = vunpack.c.l.b16 %v1875
    %v1890 = vunpack.c.l.b16 %v1876
    %v1891 = vunpack.c.l.b16 %v1877
    %v1892 = vpack.c.b16 %v1889, %v1888
    %v1893 = vpack.c.b16 %v1891, %v1890
    %v1897 = vsel %vm256, %v1880, 0
    %1899 = vmatpush.bf16.msra.mxu0 0
    %1900 = vmatpush.bf16.msra.mxu0 0
    %1901 = vmatpush.bf16.msra.mxu0 0
    %1902 = vmatpush.bf16.msra.mxu0 0
    %1903 = vmatpush.bf16.msra.mxu0 0
    %1904 = vmatpush.bf16.msra.mxu0 0
    %1905 = vmatpush.bf16.msra.mxu0 %v1893
    %1906 = vmatpush.bf16.msra.mxu0 %v1892
    %1907 = vmatmul.bf16.gmra.mxu0 %v1897
    %v1908 = vpop.f32.mrf.mxu0
    %v1909 = vadd.f32 %v1882, %v1908
    %v1910 = vpop.f32.mrf.mxu0
    %v1911 = vadd.f32 %v1882, %v1910
    %1912 = vdwg.mxu0
    %v1913 = vmax.f32 %v1909, 0.0
    %v1914 = vmax.f32 %v1911, 0.0
    %s1915 = scalar_lea.vmem %s10, 32
    %v1916 = vld [vmem:[%s1915] sm:$0xf]
    %v1917 = vld [vmem:[%s1915 + $0x4] sm:$0xf]
    %v1918 = vld [vmem:[%s1915 + $0x8] sm:$0xf]
    %v1919 = vld [vmem:[%s1915 + $0xc] sm:$0xf]
    %v1920 = vld [vmem:[%s1915 + $0x10] sm:$0xf]
    %v1921 = vld [vmem:[%s1915 + $0x14] sm:$0xf]
    %v1922 = vld [vmem:[%s1915 + $0x18] sm:$0xf]
    %v1923 = vld [vmem:[%s1915 + $0x1c] sm:$0xf]
    %s1924 = scalar_lea.vmem [#allocation9], 1
    %v1925 = vld [vmem:[%s1924] sm:$0x1]
    %v1926 = vpack.c.bf16 %v1914, %v1913
    %v1928 = vperm.slane %v1925, 0
    %v1938 = vunpack.c.l.b16 %v1916
    %v1939 = vunpack.c.l.b16 %v1917
    %v1940 = vunpack.c.l.b16 %v1918
    %v1941 = vunpack.c.l.b16 %v1919
    %v1942 = vunpack.c.l.b16 %v1920
    %v1943 = vunpack.c.l.b16 %v1921
    %v1944 = vunpack.c.l.b16 %v1922
    %v1945 = vunpack.c.l.b16 %v1923
    %v1946 = vpack.c.b16 %v1939, %v1938
    %v1947 = vpack.c.b16 %v1941, %v1940
    %v1948 = vpack.c.b16 %v1943, %v1942
    %v1949 = vpack.c.b16 %v1945, %v1944
    %v1955 = vsel %vm1055, %v1926, 0
    %1957 = vmatpush.bf16.msra.mxu0 0
    %1958 = vmatpush.bf16.msra.mxu0 0
    %1959 = vmatpush.bf16.msra.mxu0 0
    %1960 = vmatpush.bf16.msra.mxu0 0
    %1961 = vmatpush.bf16.msra.mxu0 %v1949
    %1962 = vmatpush.bf16.msra.mxu0 %v1948
    %1963 = vmatpush.bf16.msra.mxu0 %v1947
    %1964 = vmatpush.bf16.msra.mxu0 %v1946
    %1965 = vmatmul.bf16.gmra.mxu0 %v1955
    %v1966 = vpop.f32.mrf.mxu0
    %v1967 = vadd.f32 %v1928, %v1966
    %v1968 = vpop.f32.mrf.mxu0
    %v1969 = vadd.f32 %v1928, %v1968
    %1970 = vdwg.mxu0
    %v1971 = vadd.f32 %v1871, %v1967
    %v1972 = vadd.f32 %v1872, %v1969
    %s1973 = scalar_lea.vmem [#allocation13], 1
    %v1974 = vld [vmem:[%s1973] sm:$0x1]
    %s1975 = scalar_lea.vmem [#allocation15], 1
    %v1976 = vld [vmem:[%s1975] sm:$0x1]
    %v1977 = vsel %vm256, %v1971, 0.0
    %1978 = vadd.xlane.f32.xlu0 %v1977
    %v1979 = vpop.xlane.xlu0 %1978
    %v1980 = vsel %vm256, %v1972, 0.0
    %1981 = vadd.xlane.f32.xlu0 %v1980
    %v1982 = vpop.xlane.xlu0 %1981
    %v1983 = vmul.f32 %v1979, %v929
    %v1984 = vmul.f32 %v1982, %v929
    %v1985 = vsub.f32 %v1971, %v1983
    %v1986 = vsub.f32 %v1972, %v1984
    %v1987 = vmul.f32 %v1985, %v1985
    %v1988 = vmul.f32 %v1986, %v1986
    %v1989 = vsel %vm256, %v1987, 0.0
    %1990 = vadd.xlane.f32.xlu0 %v1989
    %v1991 = vpop.xlane.xlu0 %1990
    %v1992 = vsel %vm256, %v1988, 0.0
    %1993 = vadd.xlane.f32.xlu0 %v1992
    %v1994 = vpop.xlane.xlu0 %1993
    %v1995 = vmul.f32 %v1991, %v929
    %v1996 = vmul.f32 %v1994, %v929
    %v1997 = vadd.f32 %v1995, 1e-05
    %v1998 = vadd.f32 %v1996, 1e-05
    %v1999 = vrsqrt.pop %v1997
    %v2000 = vmul.f32 %v1999, %v1997
    %v2001 = vmul.f32 %v2000, %v1999
    %v2002 = vmul.f32 0.5, %v2001
    %v2003 = vsub.f32 1.5, %v2002
    %v2004 = vmul.f32 %v1999, %v2003
    %vm2005 = vweird.f32 %v1997
    %vm2006 = vweird.f32 %v1999
    %vm2007 = vmor %vm2005, %vm2006
    %v2008 = vsel %vm2007, %v1999, %v2004
    %v2009 = vrsqrt.pop %v1998
    %v2010 = vmul.f32 %v2009, %v1998
    %v2011 = vmul.f32 %v2010, %v2009
    %v2012 = vmul.f32 0.5, %v2011
    %v2013 = vsub.f32 1.5, %v2012
    %v2014 = vmul.f32 %v2009, %v2013
    %vm2015 = vweird.f32 %v1998
    %vm2016 = vweird.f32 %v2009
    %vm2017 = vmor %vm2015, %vm2016
    %v2018 = vsel %vm2017, %v2009, %v2014
    %v2019 = vmul.f32 %v1985, %v2008
    %v2020 = vmul.f32 %v1986, %v2018
    %v2022 = vperm.slane %v1974, 0
    %v2024 = vmul.f32 %v2019, %v2022
    %v2025 = vmul.f32 %v2020, %v2022
    %v2027 = vperm.slane %v1976, 0
    %v2029 = vadd.f32 %v2024, %v2027
    %v2030 = vadd.f32 %v2025, %v2027
    %v2031 = vld [vmem:[#allocation16] sm:$0x1]
    %v2032 = vld [vmem:[#allocation18] sm:$0x1]
    %v2033 = vsel %vm256, %v2029, 0.0
    %2034 = vadd.xlane.f32.xlu0 %v2033
    %v2035 = vpop.xlane.xlu0 %2034
    %v2036 = vsel %vm256, %v2030, 0.0
    %2037 = vadd.xlane.f32.xlu0 %v2036
    %v2038 = vpop.xlane.xlu0 %2037
    %v2039 = vmul.f32 %v2035, %v929
    %v2040 = vmul.f32 %v2038, %v929
    %v2041 = vsub.f32 %v2029, %v2039
    %v2042 = vsub.f32 %v2030, %v2040
    %v2043 = vmul.f32 %v2041, %v2041
    %v2044 = vmul.f32 %v2042, %v2042
    %v2045 = vsel %vm256, %v2043, 0.0
    %2046 = vadd.xlane.f32.xlu0 %v2045
    %v2047 = vpop.xlane.xlu0 %2046
    %v2048 = vsel %vm256, %v2044, 0.0
    %2049 = vadd.xlane.f32.xlu0 %v2048
    %v2050 = vpop.xlane.xlu0 %2049
    %v2051 = vmul.f32 %v2047, %v929
    %v2052 = vmul.f32 %v2050, %v929
    %v2053 = vadd.f32 %v2051, 1e-05
    %v2054 = vadd.f32 %v2052, 1e-05
    %v2055 = vrsqrt.pop %v2053
    %v2056 = vmul.f32 %v2055, %v2053
    %v2057 = vmul.f32 %v2056, %v2055
    %v2058 = vmul.f32 0.5, %v2057
    %v2059 = vsub.f32 1.5, %v2058
    %v2060 = vmul.f32 %v2055, %v2059
    %vm2061 = vweird.f32 %v2053
    %vm2062 = vweird.f32 %v2055
    %vm2063 = vmor %vm2061, %vm2062
    %v2064 = vsel %vm2063, %v2055, %v2060
    %v2065 = vrsqrt.pop %v2054
    %v2066 = vmul.f32 %v2065, %v2054
    %v2067 = vmul.f32 %v2066, %v2065
    %v2068 = vmul.f32 0.5, %v2067
    %v2069 = vsub.f32 1.5, %v2068
    %v2070 = vmul.f32 %v2065, %v2069
    %vm2071 = vweird.f32 %v2054
    %vm2072 = vweird.f32 %v2065
    %vm2073 = vmor %vm2071, %vm2072
    %v2074 = vsel %vm2073, %v2065, %v2070
    %v2075 = vmul.f32 %v2041, %v2064
    %v2076 = vmul.f32 %v2042, %v2074
    %v2078 = vperm.slane %v2031, 0
    %v2080 = vmul.f32 %v2075, %v2078
    %v2081 = vmul.f32 %v2076, %v2078
    %v2083 = vperm.slane %v2032, 0
    %v2085 = vadd.f32 %v2080, %v2083
    %v2086 = vadd.f32 %v2081, %v2083
    %2087 = vst.msk [vmem:[%s18] sm:$0xff] %vm256, %v2085
    %2088 = vst.msk [vmem:[%s18 + $0x8] sm:$0xff] %vm256, %v2086
    %v2091 = vrot.slane %v1130, 7
    %vm2092 = vcmask 1041409
    %v2093 = vsel %vm2092, %v2091, %v1129
    %v2097 = vrot.slane %v2029, 6
    %v2098 = vrot.slane %v2030, 5
    %vm2099 = vcmask 1043459
    %v2100 = vsel %vm2099, %v2098, %v2097
    %vm2102 = vcmask 1041408
    %v2103 = vsel %vm2102, %v2093, %v2100
    %vm2104 = vcmask 257024
    %2105 = vst.msk [vmem:[%s19] sm:$0xf] %vm2104, %v2103
    // Predicated region
    $region118: #{transformer_encoder_forward.1} parent=1 // pred_check
      _
    $region119: #{transformer_encoder_forward.1} parent=1 // pred_check_branch
      %2107 = sbr.rel (0) target = $region121
    $region120: #{transformer_encoder_forward.1} parent=1 // pred_region
      _
    $region121: #{transformer_encoder_forward.1} parent=1 // pred_fallthru
      _
    // Predicated region
    $region122: #{transformer_encoder_forward.1} parent=1 // pred_check
      _
    $region123: #{transformer_encoder_forward.1} parent=1 // pred_check_branch
      %2109 = sbr.rel (0) target = $region125
    $region124: #{transformer_encoder_forward.1} parent=1 // pred_region
      _
    $region125: #{transformer_encoder_forward.1} parent=1 // pred_fallthru
      _
    // Predicated region
    $region126: #{transformer_encoder_forward.1} parent=1 // pred_check
      _
    $region127: #{transformer_encoder_forward.1} parent=1 // pred_check_branch
      %2111 = sbr.rel (0) target = $region129
    $region128: #{transformer_encoder_forward.1} parent=1 // pred_region
      _
    $region129: #{transformer_encoder_forward.1} parent=1 // pred_fallthru
      _
    // Predicated region
    $region130: #{transformer_encoder_forward.1} parent=1 // pred_check
      _
    $region131: #{transformer_encoder_forward.1} parent=1 // pred_check_branch
      %2113 = sbr.rel (0) target = $region133
    $region132: #{transformer_encoder_forward.1} parent=1 // pred_region
      _
    $region133: #{transformer_encoder_forward.1} parent=1 // pred_fallthru
      _
    %2114 = vsyncpa [#allocation3], 1
    %2115 = vsyncpa [#allocation5], 1
    %2116 = vsyncpa [#allocation8], 1
    %2117 = vsyncpa [#allocation11], 1
    %2118 = vsyncpa [#allocation14], 1
    %2119 = vsyncpa [#allocation17], 1

</llo_original>
